<compile_context>
chip_gen: v7x
topology: tpu7x:2x2x1
jax: 0.10.0
libtpu: 0.0.40
codegen_flags: <defaults>
</compile_context>

<pallas_src>
import functools

import numpy as np
import jax
import jax.numpy as jnp
from jax import lax
from jax.experimental import pallas as pl
from jax.experimental.pallas import tpu as pltpu


# ----------------------------------------------------------------------------
# Pallas kernel: one pyramid level, tiled over the flattened spatial axis.
# Adds  level_weight * (ce_w*CE + dice_w*Dice)  onto the running accumulator.
# ----------------------------------------------------------------------------
def _ce_dice_level_kernel(acc_ref, logs_ref, yb_ref, out_ref,
                          ce_acc, tp_acc, st_acc, sp_acc,
                          *, ce_weight, dice_weight, level_weight, eps, s_total):
    # acc_ref/out_ref: (1,1) f32 (aliased running loss)
    # logs_ref: (B, C, TS) logits ; yb_ref: (B, C, TS) one-hot (bf16/f32)
    # scratch: ce_acc/tp_acc/st_acc/sp_acc: (B, C) f32 partial sums
    B, C, _ = logs_ref.shape

    @pl.when(pl.program_id(0) == 0)
    def _init():
        ce_acc[...] = jnp.zeros_like(ce_acc)
        tp_acc[...] = jnp.zeros_like(tp_acc)
        st_acc[...] = jnp.zeros_like(st_acc)
        sp_acc[...] = jnp.zeros_like(sp_acc)

    logs = logs_ref[...].astype(jnp.float32)
    yb = yb_ref[...].astype(jnp.float32)

    # --- channel softmax / log-softmax (axis=1), f32 throughout --------------
    m = jnp.max(logs, axis=1, keepdims=True)          # (B, 1, TS)
    z = logs - m
    ez = jnp.exp(z)
    denom = jnp.sum(ez, axis=1, keepdims=True)        # (B, 1, TS)
    inv_denom = pl.reciprocal(denom)                  # 1/C of the divide work
    sm = ez * inv_denom                               # (B, C, TS)
    log_sm = z - jnp.log(denom)                       # (B, C, TS)

    # --- per-tile partial reductions over the spatial (lane) axis ------------
    ce_acc[...] += jnp.sum(yb * log_sm, axis=2)       # (B, C)
    tp_acc[...] += jnp.sum(yb * sm, axis=2)           # (B, C)
    st_acc[...] += jnp.sum(yb, axis=2)                # (B, C)
    sp_acc[...] += jnp.sum(sm, axis=2)                # (B, C)

    # --- finalize on the last spatial tile ------------------------------------
    @pl.when(pl.program_id(0) == pl.num_programs(0) - 1)
    def _finalize():
        tp = tp_acc[...]
        st = st_acc[...]
        sp = sp_acc[...]
        # dice = (2tp+eps)/(2tp+fn+fp+eps) with fn = st - tp, fp = sp - tp
        dice = (2.0 * tp + eps) / (st + sp + eps)                  # (B, C)
        ch = lax.broadcasted_iota(jnp.int32, (B, C), 1)
        dice_fg = jnp.where(ch >= 1, dice, 0.0)                    # drop background
        dice_sum = jnp.sum(jnp.sum(dice_fg, axis=0, keepdims=True),
                           axis=1, keepdims=True)                  # (1, 1)
        n_fg = max(C - 1, 1)
        dice_loss = 1.0 - dice_sum / jnp.float32(B * n_fg)

        ce_sum = jnp.sum(jnp.sum(ce_acc[...], axis=0, keepdims=True),
                         axis=1, keepdims=True)                    # (1, 1)
        ce = -ce_sum / jnp.float32(B * s_total)

        level_loss = jnp.float32(level_weight) * (
            jnp.float32(ce_weight) * ce + jnp.float32(dice_weight) * dice_loss)
        out_ref[...] = acc_ref[...] + level_loss


def _choose_spatial_tile(s, max_tile=4096):
    """Largest lane tile <= max_tile that is a multiple of 128 and divides s."""
    if s <= max_tile:
        return s
    ts = (max_tile // 128) * 128
    while ts >= 128:
        if s % ts == 0:
            return ts
        ts -= 128
    return s  # fall back to a single block


def _level_loss_acc(acc, logs, yb_oh, *, ce_weight, dice_weight, level_weight,
                    eps=1e-5, max_tile=4096):
    """acc + level_weight * (weighted CE+dice) for one level. logs: (B,C,H,W)."""
    B, C, H, W = logs.shape
    S = H * W
    TS = _choose_spatial_tile(S, max_tile)
    num_tiles = S // TS
    logs3 = logs.reshape(B, C, S)
    yb3 = yb_oh.reshape(B, C, S)
    kernel = functools.partial(
        _ce_dice_level_kernel,
        ce_weight=float(ce_weight), dice_weight=float(dice_weight),
        level_weight=float(level_weight), eps=float(eps), s_total=int(S))
    return pl.pallas_call(
        kernel,
        out_shape=jax.ShapeDtypeStruct((1, 1), jnp.float32),
        grid=(num_tiles,),
        in_specs=[pl.BlockSpec((1, 1), lambda s: (0, 0)),
                  pl.BlockSpec((B, C, TS), lambda s: (0, 0, s)),
                  pl.BlockSpec((B, C, TS), lambda s: (0, 0, s))],
        out_specs=pl.BlockSpec((1, 1), lambda s: (0, 0)),
        scratch_shapes=[pltpu.VMEM((B, C), jnp.float32) for _ in range(4)],
        input_output_aliases={0: 0},   # running loss accumulated in place
        compiler_params=pltpu.CompilerParams(
            dimension_semantics=("arbitrary",)),
    )(acc, logs3, yb3)


# ----------------------------------------------------------------------------
# Plain-JAX glue matching the PyTorch module's forward
# ----------------------------------------------------------------------------
def _to_one_hot_encoding_bf16(yb, n_ch):
    # yb: (B, 1, H, W) integer labels -> (B, n_ch, H, W) bf16 one-hot
    # (bf16 halves HBM traffic for the target stream; exact for {0,1})
    yb = yb.astype(jnp.int32)
    classes = jnp.arange(n_ch, dtype=jnp.int32).reshape(1, n_ch, 1, 1)
    return (yb == classes).astype(jnp.bfloat16)


def _adaptive_max_pool2d(x, out_hw):
    # matches F.adaptive_max_pool2d when input dims are divisible by output dims
    B, C, H, W = x.shape
    oh, ow = out_hw
    assert H % oh == 0 and W % ow == 0, "pyramid levels must divide input size"
    return x.reshape(B, C, oh, H // oh, ow, W // ow).max(axis=(3, 5))


class WeightedCombinedPyramidLoss:
    """JAX/Pallas equivalent of ovseg weighted_combined_pyramid_loss."""

    def __init__(self, loss_names=("cross_entropy", "dice_loss"),
                 loss_weights=None, pyramid_weight=0.5):
        self.loss_names = list(loss_names)
        self.loss_weights = (list(loss_weights) if loss_weights is not None
                             else [1.0] * len(self.loss_names))
        assert len(self.loss_names) == len(self.loss_weights)
        for n in self.loss_names:
            assert n in ("cross_entropy", "dice_loss"), f"unsupported loss {n}"
        self.pyramid_weight = pyramid_weight
        self.ce_weight = sum(w for n, w in zip(self.loss_names, self.loss_weights)
                             if n == "cross_entropy")
        self.dice_weight = sum(w for n, w in zip(self.loss_names, self.loss_weights)
                               if n == "dice_loss")
        self._jitted = jax.jit(self._forward)

    def _forward(self, logs_list, yb):
        n_ch = logs_list[0].shape[1]
        if self.dice_weight != 0.0:
            assert n_ch >= 2, "dice_loss requires at least one foreground channel"
        if yb.shape[1] == 1:
            yb = _to_one_hot_encoding_bf16(yb, n_ch)
        n_scales = len(logs_list)
        scale_weights = self.pyramid_weight ** np.arange(n_scales)
        scale_weights = scale_weights / np.sum(scale_weights)
        yb_list = [_adaptive_max_pool2d(yb, logs.shape[2:]) for logs in logs_list]
        acc = jnp.zeros((1, 1), jnp.float32)
        for logs, yb_s, w in zip(logs_list, yb_list, scale_weights):
            acc = _level_loss_acc(acc, logs, yb_s,
                                  ce_weight=self.ce_weight,
                                  dice_weight=self.dice_weight,
                                  level_weight=float(w))
        return acc[0, 0]

    def __call__(self, logs_list, yb, mask=None):
        # TODO(synk): tensor-valued `mask` path (mask downsampling + masked
        # leaf losses) not implemented; only mask=None is supported here.
        assert mask is None, "only mask=None is supported"
        return self._jitted(list(logs_list), yb)


# ----------------------------------------------------------------------------
# Driver
# ----------------------------------------------------------------------------
if __name__ == "__main__":
    key = jax.random.PRNGKey(0)
    B, C, H, W = 2, 4, 16, 16
    n_scales = 3

    keys = jax.random.split(key, n_scales + 1)
    logs_list = []
    for s in range(n_scales):
        hs, ws = H // (2 ** s), W // (2 ** s)
        logs_list.append(
            jax.random.normal(keys[s], (B, C, hs, ws), dtype=jnp.float32))
    # integer label map (B, 1, H, W), values in [0, C)
    yb = jax.random.randint(keys[-1], (B, 1, H, W), 0, C, dtype=jnp.int32)

    loss_fn = WeightedCombinedPyramidLoss(
        loss_names=("cross_entropy", "dice_loss"),
        loss_weights=(1.0, 1.0),
        pyramid_weight=0.5,
    )

    loss = loss_fn(logs_list, yb, mask=None)
    jax.block_until_ready(loss)
    assert loss.shape == () and jnp.isfinite(loss)
    print("KERNEL_OK")
</pallas_src>

<mosaic_0001>
module attributes {stable_mosaic.version = 11 : i64} {
  func.func @_ce_dice_level_kernel(%arg0: i32, %arg1: memref<1x1xf32, #tpu.memory_space<vmem>>, %arg2: memref<2x4x256xf32, #tpu.memory_space<vmem>>, %arg3: memref<2x4x256xbf16, #tpu.memory_space<vmem>>, %arg4: memref<1x1xf32, #tpu.memory_space<vmem>>, %arg5: memref<2x4xf32, #tpu.memory_space<vmem>>, %arg6: memref<2x4xf32, #tpu.memory_space<vmem>>, %arg7: memref<2x4xf32, #tpu.memory_space<vmem>>, %arg8: memref<2x4xf32, #tpu.memory_space<vmem>>) attributes {dimension_semantics = [#tpu.dimension_semantics<arbitrary>], iteration_bounds = array<i64: 1>, scalar_prefetch = 0 : i64, scratch_operands = 4 : i64, tpu.core_type = #tpu.core_type<tc>, window_params = [{pipeline_mode = #tpu.pipeline_mode<synchronous>, transform_indices = @transform_0, window_bounds = array<i64: 1, 1>}, {transform_indices = @transform_1, window_bounds = array<i64: 2, 4, 256>}, {transform_indices = @transform_2, window_bounds = array<i64: 2, 4, 256>}, {pipeline_mode = #tpu.pipeline_mode<synchronous>, transform_indices = @transform_3, window_bounds = array<i64: 1, 1>}]} {
    %c0_i32 = arith.constant 0 : i32
    %0 = arith.cmpi eq, %arg0, %c0_i32 : i32
    %1 = arith.extui %0 : i1 to i32
    %c0_i32_0 = arith.constant 0 : i32
    %2 = arith.cmpi ne, %1, %c0_i32_0 : i32
    scf.if %2 {
      %cst_29 = arith.constant 0.000000e+00 : f32
      %40 = vector.broadcast %cst_29 : f32 to vector<2x4xf32>
      %c0_30 = arith.constant 0 : index
      %c0_31 = arith.constant 0 : index
      %41 = vector.load %arg5[%c0_30, %c0_31] : memref<2x4xf32, #tpu.memory_space<vmem>>, vector<2x4xf32>
      tpu.vector_store %arg5[%c0_30, %c0_31], %40 {strides = array<i32>} : memref<2x4xf32, #tpu.memory_space<vmem>>, vector<2x4xf32>,
      %cst_32 = arith.constant 0.000000e+00 : f32
      %42 = vector.broadcast %cst_32 : f32 to vector<2x4xf32>
      %c0_33 = arith.constant 0 : index
      %c0_34 = arith.constant 0 : index
      %43 = vector.load %arg6[%c0_33, %c0_34] : memref<2x4xf32, #tpu.memory_space<vmem>>, vector<2x4xf32>
      tpu.vector_store %arg6[%c0_33, %c0_34], %42 {strides = array<i32>} : memref<2x4xf32, #tpu.memory_space<vmem>>, vector<2x4xf32>,
      %cst_35 = arith.constant 0.000000e+00 : f32
      %44 = vector.broadcast %cst_35 : f32 to vector<2x4xf32>
      %c0_36 = arith.constant 0 : index
      %c0_37 = arith.constant 0 : index
      %45 = vector.load %arg7[%c0_36, %c0_37] : memref<2x4xf32, #tpu.memory_space<vmem>>, vector<2x4xf32>
      tpu.vector_store %arg7[%c0_36, %c0_37], %44 {strides = array<i32>} : memref<2x4xf32, #tpu.memory_space<vmem>>, vector<2x4xf32>,
      %cst_38 = arith.constant 0.000000e+00 : f32
      %46 = vector.broadcast %cst_38 : f32 to vector<2x4xf32>
      %c0_39 = arith.constant 0 : index
      %c0_40 = arith.constant 0 : index
      %47 = vector.load %arg8[%c0_39, %c0_40] : memref<2x4xf32, #tpu.memory_space<vmem>>, vector<2x4xf32>
      tpu.vector_store %arg8[%c0_39, %c0_40], %46 {strides = array<i32>} : memref<2x4xf32, #tpu.memory_space<vmem>>, vector<2x4xf32>,
    } else {
    }
    %c0 = arith.constant 0 : index
    %c0_1 = arith.constant 0 : index
    %c0_2 = arith.constant 0 : index
    %3 = vector.load %arg2[%c0, %c0_1, %c0_2] : memref<2x4x256xf32, #tpu.memory_space<vmem>>, vector<2x4x256xf32>
    %c0_3 = arith.constant 0 : index
    %c0_4 = arith.constant 0 : index
    %c0_5 = arith.constant 0 : index
    %4 = vector.load %arg3[%c0_3, %c0_4, %c0_5] : memref<2x4x256xbf16, #tpu.memory_space<vmem>>, vector<2x4x256xbf16>
    %5 = arith.extf %4 : vector<2x4x256xbf16> to vector<2x4x256xf32>
    %cst = arith.constant dense<0xFF800000> : vector<2x256xf32>
    %6 = vector.multi_reduction <maximumf>, %3, %cst [1] : vector<2x4x256xf32> to vector<2x256xf32>
    %7 = vector.shape_cast %6 : vector<2x256xf32> to vector<2x1x256xf32>
    %8 = vector.broadcast %7 : vector<2x1x256xf32> to vector<2x4x256xf32>
    %9 = arith.subf %3, %8 : vector<2x4x256xf32>
    %10 = math.exp %9 : vector<2x4x256xf32>
    %cst_6 = arith.constant dense<0.000000e+00> : vector<2x256xf32>
    %11 = vector.multi_reduction <add>, %10, %cst_6 [1] : vector<2x4x256xf32> to vector<2x256xf32>
    %12 = vector.shape_cast %11 : vector<2x256xf32> to vector<2x1x256xf32>
    %13 = tpu.reciprocal %12 : vector<2x1x256xf32> -> vector<2x1x256xf32>
    %14 = vector.broadcast %13 : vector<2x1x256xf32> to vector<2x4x256xf32>
    %15 = arith.mulf %10, %14 : vector<2x4x256xf32>
    %16 = math.log %12 : vector<2x1x256xf32>
    %17 = vector.broadcast %16 : vector<2x1x256xf32> to vector<2x4x256xf32>
    %18 = arith.subf %9, %17 : vector<2x4x256xf32>
    %c0_7 = arith.constant 0 : index
    %c0_8 = arith.constant 0 : index
    %19 = vector.load %arg5[%c0_7, %c0_8] : memref<2x4xf32, #tpu.memory_space<vmem>>, vector<2x4xf32>
    %20 = arith.mulf %5, %18 : vector<2x4x256xf32>
    %cst_9 = arith.constant dense<0.000000e+00> : vector<2x4xf32>
    %21 = vector.multi_reduction <add>, %20, %cst_9 [2] : vector<2x4x256xf32> to vector<2x4xf32>
    %22 = arith.addf %19, %21 : vector<2x4xf32>
    %c0_10 = arith.constant 0 : index
    %c0_11 = arith.constant 0 : index
    %23 = vector.load %arg5[%c0_10, %c0_11] : memref<2x4xf32, #tpu.memory_space<vmem>>, vector<2x4xf32>
    tpu.vector_store %arg5[%c0_10, %c0_11], %22 {strides = array<i32>} : memref<2x4xf32, #tpu.memory_space<vmem>>, vector<2x4xf32>,
    %c0_12 = arith.constant 0 : index
    %c0_13 = arith.constant 0 : index
    %24 = vector.load %arg6[%c0_12, %c0_13] : memref<2x4xf32, #tpu.memory_space<vmem>>, vector<2x4xf32>
    %25 = arith.mulf %5, %15 : vector<2x4x256xf32>
    %cst_14 = arith.constant dense<0.000000e+00> : vector<2x4xf32>
    %26 = vector.multi_reduction <add>, %25, %cst_14 [2] : vector<2x4x256xf32> to vector<2x4xf32>
    %27 = arith.addf %24, %26 : vector<2x4xf32>
    %c0_15 = arith.constant 0 : index
    %c0_16 = arith.constant 0 : index
    %28 = vector.load %arg6[%c0_15, %c0_16] : memref<2x4xf32, #tpu.memory_space<vmem>>, vector<2x4xf32>
    tpu.vector_store %arg6[%c0_15, %c0_16], %27 {strides = array<i32>} : memref<2x4xf32, #tpu.memory_space<vmem>>, vector<2x4xf32>,
    %c0_17 = arith.constant 0 : index
    %c0_18 = arith.constant 0 : index
    %29 = vector.load %arg7[%c0_17, %c0_18] : memref<2x4xf32, #tpu.memory_space<vmem>>, vector<2x4xf32>
    %cst_19 = arith.constant dense<0.000000e+00> : vector<2x4xf32>
    %30 = vector.multi_reduction <add>, %5, %cst_19 [2] : vector<2x4x256xf32> to vector<2x4xf32>
    %31 = arith.addf %29, %30 : vector<2x4xf32>
    %c0_20 = arith.constant 0 : index
    %c0_21 = arith.constant 0 : index
    %32 = vector.load %arg7[%c0_20, %c0_21] : memref<2x4xf32, #tpu.memory_space<vmem>>, vector<2x4xf32>
    tpu.vector_store %arg7[%c0_20, %c0_21], %31 {strides = array<i32>} : memref<2x4xf32, #tpu.memory_space<vmem>>, vector<2x4xf32>,
    %c0_22 = arith.constant 0 : index
    %c0_23 = arith.constant 0 : index
    %33 = vector.load %arg8[%c0_22, %c0_23] : memref<2x4xf32, #tpu.memory_space<vmem>>, vector<2x4xf32>
    %cst_24 = arith.constant dense<0.000000e+00> : vector<2x4xf32>
    %34 = vector.multi_reduction <add>, %15, %cst_24 [2] : vector<2x4x256xf32> to vector<2x4xf32>
    %35 = arith.addf %33, %34 : vector<2x4xf32>
    %c0_25 = arith.constant 0 : index
    %c0_26 = arith.constant 0 : index
    %36 = vector.load %arg8[%c0_25, %c0_26] : memref<2x4xf32, #tpu.memory_space<vmem>>, vector<2x4xf32>
    tpu.vector_store %arg8[%c0_25, %c0_26], %35 {strides = array<i32>} : memref<2x4xf32, #tpu.memory_space<vmem>>, vector<2x4xf32>,
    %c0_i32_27 = arith.constant 0 : i32
    %37 = arith.cmpi eq, %arg0, %c0_i32_27 : i32
    %38 = arith.extui %37 : i1 to i32
    %c0_i32_28 = arith.constant 0 : i32
    %39 = arith.cmpi ne, %38, %c0_i32_28 : i32
    scf.if %39 {
      %c0_29 = arith.constant 0 : index
      %c0_30 = arith.constant 0 : index
      %40 = vector.load %arg6[%c0_29, %c0_30] : memref<2x4xf32, #tpu.memory_space<vmem>>, vector<2x4xf32>
      %c0_31 = arith.constant 0 : index
      %c0_32 = arith.constant 0 : index
      %41 = vector.load %arg7[%c0_31, %c0_32] : memref<2x4xf32, #tpu.memory_space<vmem>>, vector<2x4xf32>
      %c0_33 = arith.constant 0 : index
      %c0_34 = arith.constant 0 : index
      %42 = vector.load %arg8[%c0_33, %c0_34] : memref<2x4xf32, #tpu.memory_space<vmem>>, vector<2x4xf32>
      %cst_35 = arith.constant 2.000000e+00 : f32
      %43 = vector.broadcast %cst_35 : f32 to vector<2x4xf32>
      %44 = arith.mulf %43, %40 : vector<2x4xf32>
      %cst_36 = arith.constant 9.99999974E-6 : f32
      %45 = vector.broadcast %cst_36 : f32 to vector<2x4xf32>
      %46 = arith.addf %44, %45 : vector<2x4xf32>
      %47 = arith.addf %41, %42 : vector<2x4xf32>
      %cst_37 = arith.constant 9.99999974E-6 : f32
      %48 = vector.broadcast %cst_37 : f32 to vector<2x4xf32>
      %49 = arith.addf %47, %48 : vector<2x4xf32>
      %50 = arith.divf %46, %49 : vector<2x4xf32>
      %51 = tpu.iota {dimensions = array<i32: 1>} : vector<2x4xi32>
      %c1_i32 = arith.constant 1 : i32
      %52 = vector.broadcast %c1_i32 : i32 to vector<2x4xi32>
      %53 = arith.cmpi sge, %51, %52 : vector<2x4xi32>
      %cst_38 = arith.constant 0.000000e+00 : f32
      %54 = vector.broadcast %cst_38 : f32 to vector<2x4xf32>
      %55 = arith.select %53, %50, %54 : vector<2x4xi1>, vector<2x4xf32>
      %cst_39 = arith.constant dense<0.000000e+00> : vector<4xf32>
      %56 = vector.multi_reduction <add>, %55, %cst_39 [0] : vector<2x4xf32> to vector<4xf32>
      %57 = vector.shape_cast %56 : vector<4xf32> to vector<1x4xf32>
      %cst_40 = arith.constant dense<0.000000e+00> : vector<1xf32>
      %58 = vector.multi_reduction <add>, %57, %cst_40 [1] : vector<1x4xf32> to vector<1xf32>
      %59 = vector.shape_cast %58 : vector<1xf32> to vector<1x1xf32>
      %cst_41 = arith.constant 6.000000e+00 : f32
      %60 = vector.broadcast %cst_41 : f32 to vector<1x1xf32>
      %61 = arith.divf %59, %60 : vector<1x1xf32>
      %cst_42 = arith.constant 1.000000e+00 : f32
      %62 = vector.broadcast %cst_42 : f32 to vector<1x1xf32>
      %63 = arith.subf %62, %61 : vector<1x1xf32>
      %c0_43 = arith.constant 0 : index
      %c0_44 = arith.constant 0 : index
      %64 = vector.load %arg5[%c0_43, %c0_44] : memref<2x4xf32, #tpu.memory_space<vmem>>, vector<2x4xf32>
      %cst_45 = arith.constant dense<0.000000e+00> : vector<4xf32>
      %65 = vector.multi_reduction <add>, %64, %cst_45 [0] : vector<2x4xf32> to vector<4xf32>
      %66 = vector.shape_cast %65 : vector<4xf32> to vector<1x4xf32>
      %cst_46 = arith.constant dense<0.000000e+00> : vector<1xf32>
      %67 = vector.multi_reduction <add>, %66, %cst_46 [1] : vector<1x4xf32> to vector<1xf32>
      %68 = vector.shape_cast %67 : vector<1xf32> to vector<1x1xf32>
      %cst_47 = arith.constant 0.000000e+00 : f32
      %69 = vector.broadcast %cst_47 : f32 to vector<1x1xf32>
      %70 = arith.subf %69, %68 : vector<1x1xf32>
      %cst_48 = arith.constant 5.120000e+02 : f32
      %71 = vector.broadcast %cst_48 : f32 to vector<1x1xf32>
      %72 = arith.divf %70, %71 : vector<1x1xf32>
      %cst_49 = arith.constant 1.000000e+00 : f32
      %73 = vector.broadcast %cst_49 : f32 to vector<1x1xf32>
      %74 = arith.mulf %73, %72 : vector<1x1xf32>
      %cst_50 = arith.constant 1.000000e+00 : f32
      %75 = vector.broadcast %cst_50 : f32 to vector<1x1xf32>
      %76 = arith.mulf %75, %63 : vector<1x1xf32>
      %77 = arith.addf %74, %76 : vector<1x1xf32>
      %cst_51 = arith.constant 0.571428597 : f32
      %78 = vector.broadcast %cst_51 : f32 to vector<1x1xf32>
      %79 = arith.mulf %78, %77 : vector<1x1xf32>
      %c0_52 = arith.constant 0 : index
      %c0_53 = arith.constant 0 : index
      %80 = vector.load %arg1[%c0_52, %c0_53] : memref<1x1xf32, #tpu.memory_space<vmem>>, vector<1x1xf32>
      %81 = arith.addf %80, %79 : vector<1x1xf32>
      %c0_54 = arith.constant 0 : index
      %c0_55 = arith.constant 0 : index
      %82 = vector.load %arg4[%c0_54, %c0_55] : memref<1x1xf32, #tpu.memory_space<vmem>>, vector<1x1xf32>
      tpu.vector_store %arg4[%c0_54, %c0_55], %81 {strides = array<i32>} : memref<1x1xf32, #tpu.memory_space<vmem>>, vector<1x1xf32>,
    } else {
    }
    return
  }
  func.func @transform_0(%arg0: i32) -> (i32, i32) {
    %c0_i32 = arith.constant 0 : i32
    %c0_i32_0 = arith.constant 0 : i32
    %c0_i32_1 = arith.constant 0 : i32
    return %c0_i32, %c0_i32_0 : i32, i32
  }
  func.func @transform_1(%arg0: i32) -> (i32, i32, i32) {
    %c0_i32 = arith.constant 0 : i32
    %c0_i32_0 = arith.constant 0 : i32
    %c0_i32_1 = arith.constant 0 : i32
    return %c0_i32, %c0_i32_0, %arg0 : i32, i32, i32
  }
  func.func @transform_2(%arg0: i32) -> (i32, i32, i32) {
    %c0_i32 = arith.constant 0 : i32
    %c0_i32_0 = arith.constant 0 : i32
    %c0_i32_1 = arith.constant 0 : i32
    return %c0_i32, %c0_i32_0, %arg0 : i32, i32, i32
  }
  func.func @transform_3(%arg0: i32) -> (i32, i32) {
    %c0_i32 = arith.constant 0 : i32
    %c0_i32_0 = arith.constant 0 : i32
    %c0_i32_1 = arith.constant 0 : i32
    return %c0_i32, %c0_i32_0 : i32, i32
  }
}

module attributes {stable_mosaic.version = 11 : i64} {
  func.func @_ce_dice_level_kernel(%arg0: i32, %arg1: memref<1x1xf32, #tpu.memory_space<vmem>>, %arg2: memref<2x4x64xf32, #tpu.memory_space<vmem>>, %arg3: memref<2x4x64xbf16, #tpu.memory_space<vmem>>, %arg4: memref<1x1xf32, #tpu.memory_space<vmem>>, %arg5: memref<2x4xf32, #tpu.memory_space<vmem>>, %arg6: memref<2x4xf32, #tpu.memory_space<vmem>>, %arg7: memref<2x4xf32, #tpu.memory_space<vmem>>, %arg8: memref<2x4xf32, #tpu.memory_space<vmem>>) attributes {dimension_semantics = [#tpu.dimension_semantics<arbitrary>], iteration_bounds = array<i64: 1>, scalar_prefetch = 0 : i64, scratch_operands = 4 : i64, tpu.core_type = #tpu.core_type<tc>, window_params = [{pipeline_mode = #tpu.pipeline_mode<synchronous>, transform_indices = @transform_0, window_bounds = array<i64: 1, 1>}, {transform_indices = @transform_1, window_bounds = array<i64: 2, 4, 64>}, {transform_indices = @transform_2, window_bounds = array<i64: 2, 4, 64>}, {pipeline_mode = #tpu.pipeline_mode<synchronous>, transform_indices = @transform_3, window_bounds = array<i64: 1, 1>}]} {
    %c0_i32 = arith.constant 0 : i32
    %0 = arith.cmpi eq, %arg0, %c0_i32 : i32
    %1 = arith.extui %0 : i1 to i32
    %c0_i32_0 = arith.constant 0 : i32
    %2 = arith.cmpi ne, %1, %c0_i32_0 : i32
    scf.if %2 {
      %cst_29 = arith.constant 0.000000e+00 : f32
      %40 = vector.broadcast %cst_29 : f32 to vector<2x4xf32>
      %c0_30 = arith.constant 0 : index
      %c0_31 = arith.constant 0 : index
      %41 = vector.load %arg5[%c0_30, %c0_31] : memref<2x4xf32, #tpu.memory_space<vmem>>, vector<2x4xf32>
      tpu.vector_store %arg5[%c0_30, %c0_31], %40 {strides = array<i32>} : memref<2x4xf32, #tpu.memory_space<vmem>>, vector<2x4xf32>,
      %cst_32 = arith.constant 0.000000e+00 : f32
      %42 = vector.broadcast %cst_32 : f32 to vector<2x4xf32>
      %c0_33 = arith.constant 0 : index
      %c0_34 = arith.constant 0 : index
      %43 = vector.load %arg6[%c0_33, %c0_34] : memref<2x4xf32, #tpu.memory_space<vmem>>, vector<2x4xf32>
      tpu.vector_store %arg6[%c0_33, %c0_34], %42 {strides = array<i32>} : memref<2x4xf32, #tpu.memory_space<vmem>>, vector<2x4xf32>,
      %cst_35 = arith.constant 0.000000e+00 : f32
      %44 = vector.broadcast %cst_35 : f32 to vector<2x4xf32>
      %c0_36 = arith.constant 0 : index
      %c0_37 = arith.constant 0 : index
      %45 = vector.load %arg7[%c0_36, %c0_37] : memref<2x4xf32, #tpu.memory_space<vmem>>, vector<2x4xf32>
      tpu.vector_store %arg7[%c0_36, %c0_37], %44 {strides = array<i32>} : memref<2x4xf32, #tpu.memory_space<vmem>>, vector<2x4xf32>,
      %cst_38 = arith.constant 0.000000e+00 : f32
      %46 = vector.broadcast %cst_38 : f32 to vector<2x4xf32>
      %c0_39 = arith.constant 0 : index
      %c0_40 = arith.constant 0 : index
      %47 = vector.load %arg8[%c0_39, %c0_40] : memref<2x4xf32, #tpu.memory_space<vmem>>, vector<2x4xf32>
      tpu.vector_store %arg8[%c0_39, %c0_40], %46 {strides = array<i32>} : memref<2x4xf32, #tpu.memory_space<vmem>>, vector<2x4xf32>,
    } else {
    }
    %c0 = arith.constant 0 : index
    %c0_1 = arith.constant 0 : index
    %c0_2 = arith.constant 0 : index
    %3 = vector.load %arg2[%c0, %c0_1, %c0_2] : memref<2x4x64xf32, #tpu.memory_space<vmem>>, vector<2x4x64xf32>
    %c0_3 = arith.constant 0 : index
    %c0_4 = arith.constant 0 : index
    %c0_5 = arith.constant 0 : index
    %4 = vector.load %arg3[%c0_3, %c0_4, %c0_5] : memref<2x4x64xbf16, #tpu.memory_space<vmem>>, vector<2x4x64xbf16>
    %5 = arith.extf %4 : vector<2x4x64xbf16> to vector<2x4x64xf32>
    %cst = arith.constant dense<0xFF800000> : vector<2x64xf32>
    %6 = vector.multi_reduction <maximumf>, %3, %cst [1] : vector<2x4x64xf32> to vector<2x64xf32>
    %7 = vector.shape_cast %6 : vector<2x64xf32> to vector<2x1x64xf32>
    %8 = vector.broadcast %7 : vector<2x1x64xf32> to vector<2x4x64xf32>
    %9 = arith.subf %3, %8 : vector<2x4x64xf32>
    %10 = math.exp %9 : vector<2x4x64xf32>
    %cst_6 = arith.constant dense<0.000000e+00> : vector<2x64xf32>
    %11 = vector.multi_reduction <add>, %10, %cst_6 [1] : vector<2x4x64xf32> to vector<2x64xf32>
    %12 = vector.shape_cast %11 : vector<2x64xf32> to vector<2x1x64xf32>
    %13 = tpu.reciprocal %12 : vector<2x1x64xf32> -> vector<2x1x64xf32>
    %14 = vector.broadcast %13 : vector<2x1x64xf32> to vector<2x4x64xf32>
    %15 = arith.mulf %10, %14 : vector<2x4x64xf32>
    %16 = math.log %12 : vector<2x1x64xf32>
    %17 = vector.broadcast %16 : vector<2x1x64xf32> to vector<2x4x64xf32>
    %18 = arith.subf %9, %17 : vector<2x4x64xf32>
    %c0_7 = arith.constant 0 : index
    %c0_8 = arith.constant 0 : index
    %19 = vector.load %arg5[%c0_7, %c0_8] : memref<2x4xf32, #tpu.memory_space<vmem>>, vector<2x4xf32>
    %20 = arith.mulf %5, %18 : vector<2x4x64xf32>
    %cst_9 = arith.constant dense<0.000000e+00> : vector<2x4xf32>
    %21 = vector.multi_reduction <add>, %20, %cst_9 [2] : vector<2x4x64xf32> to vector<2x4xf32>
    %22 = arith.addf %19, %21 : vector<2x4xf32>
    %c0_10 = arith.constant 0 : index
    %c0_11 = arith.constant 0 : index
    %23 = vector.load %arg5[%c0_10, %c0_11] : memref<2x4xf32, #tpu.memory_space<vmem>>, vector<2x4xf32>
    tpu.vector_store %arg5[%c0_10, %c0_11], %22 {strides = array<i32>} : memref<2x4xf32, #tpu.memory_space<vmem>>, vector<2x4xf32>,
    %c0_12 = arith.constant 0 : index
    %c0_13 = arith.constant 0 : index
    %24 = vector.load %arg6[%c0_12, %c0_13] : memref<2x4xf32, #tpu.memory_space<vmem>>, vector<2x4xf32>
    %25 = arith.mulf %5, %15 : vector<2x4x64xf32>
    %cst_14 = arith.constant dense<0.000000e+00> : vector<2x4xf32>
    %26 = vector.multi_reduction <add>, %25, %cst_14 [2] : vector<2x4x64xf32> to vector<2x4xf32>
    %27 = arith.addf %24, %26 : vector<2x4xf32>
    %c0_15 = arith.constant 0 : index
    %c0_16 = arith.constant 0 : index
    %28 = vector.load %arg6[%c0_15, %c0_16] : memref<2x4xf32, #tpu.memory_space<vmem>>, vector<2x4xf32>
    tpu.vector_store %arg6[%c0_15, %c0_16], %27 {strides = array<i32>} : memref<2x4xf32, #tpu.memory_space<vmem>>, vector<2x4xf32>,
    %c0_17 = arith.constant 0 : index
    %c0_18 = arith.constant 0 : index
    %29 = vector.load %arg7[%c0_17, %c0_18] : memref<2x4xf32, #tpu.memory_space<vmem>>, vector<2x4xf32>
    %cst_19 = arith.constant dense<0.000000e+00> : vector<2x4xf32>
    %30 = vector.multi_reduction <add>, %5, %cst_19 [2] : vector<2x4x64xf32> to vector<2x4xf32>
    %31 = arith.addf %29, %30 : vector<2x4xf32>
    %c0_20 = arith.constant 0 : index
    %c0_21 = arith.constant 0 : index
    %32 = vector.load %arg7[%c0_20, %c0_21] : memref<2x4xf32, #tpu.memory_space<vmem>>, vector<2x4xf32>
    tpu.vector_store %arg7[%c0_20, %c0_21], %31 {strides = array<i32>} : memref<2x4xf32, #tpu.memory_space<vmem>>, vector<2x4xf32>,
    %c0_22 = arith.constant 0 : index
    %c0_23 = arith.constant 0 : index
    %33 = vector.load %arg8[%c0_22, %c0_23] : memref<2x4xf32, #tpu.memory_space<vmem>>, vector<2x4xf32>
    %cst_24 = arith.constant dense<0.000000e+00> : vector<2x4xf32>
    %34 = vector.multi_reduction <add>, %15, %cst_24 [2] : vector<2x4x64xf32> to vector<2x4xf32>
    %35 = arith.addf %33, %34 : vector<2x4xf32>
    %c0_25 = arith.constant 0 : index
    %c0_26 = arith.constant 0 : index
    %36 = vector.load %arg8[%c0_25, %c0_26] : memref<2x4xf32, #tpu.memory_space<vmem>>, vector<2x4xf32>
    tpu.vector_store %arg8[%c0_25, %c0_26], %35 {strides = array<i32>} : memref<2x4xf32, #tpu.memory_space<vmem>>, vector<2x4xf32>,
    %c0_i32_27 = arith.constant 0 : i32
    %37 = arith.cmpi eq, %arg0, %c0_i32_27 : i32
    %38 = arith.extui %37 : i1 to i32
    %c0_i32_28 = arith.constant 0 : i32
    %39 = arith.cmpi ne, %38, %c0_i32_28 : i32
    scf.if %39 {
      %c0_29 = arith.constant 0 : index
      %c0_30 = arith.constant 0 : index
      %40 = vector.load %arg6[%c0_29, %c0_30] : memref<2x4xf32, #tpu.memory_space<vmem>>, vector<2x4xf32>
      %c0_31 = arith.constant 0 : index
      %c0_32 = arith.constant 0 : index
      %41 = vector.load %arg7[%c0_31, %c0_32] : memref<2x4xf32, #tpu.memory_space<vmem>>, vector<2x4xf32>
      %c0_33 = arith.constant 0 : index
      %c0_34 = arith.constant 0 : index
      %42 = vector.load %arg8[%c0_33, %c0_34] : memref<2x4xf32, #tpu.memory_space<vmem>>, vector<2x4xf32>
      %cst_35 = arith.constant 2.000000e+00 : f32
      %43 = vector.broadcast %cst_35 : f32 to vector<2x4xf32>
      %44 = arith.mulf %43, %40 : vector<2x4xf32>
      %cst_36 = arith.constant 9.99999974E-6 : f32
      %45 = vector.broadcast %cst_36 : f32 to vector<2x4xf32>
      %46 = arith.addf %44, %45 : vector<2x4xf32>
      %47 = arith.addf %41, %42 : vector<2x4xf32>
      %cst_37 = arith.constant 9.99999974E-6 : f32
      %48 = vector.broadcast %cst_37 : f32 to vector<2x4xf32>
      %49 = arith.addf %47, %48 : vector<2x4xf32>
      %50 = arith.divf %46, %49 : vector<2x4xf32>
      %51 = tpu.iota {dimensions = array<i32: 1>} : vector<2x4xi32>
      %c1_i32 = arith.constant 1 : i32
      %52 = vector.broadcast %c1_i32 : i32 to vector<2x4xi32>
      %53 = arith.cmpi sge, %51, %52 : vector<2x4xi32>
      %cst_38 = arith.constant 0.000000e+00 : f32
      %54 = vector.broadcast %cst_38 : f32 to vector<2x4xf32>
      %55 = arith.select %53, %50, %54 : vector<2x4xi1>, vector<2x4xf32>
      %cst_39 = arith.constant dense<0.000000e+00> : vector<4xf32>
      %56 = vector.multi_reduction <add>, %55, %cst_39 [0] : vector<2x4xf32> to vector<4xf32>
      %57 = vector.shape_cast %56 : vector<4xf32> to vector<1x4xf32>
      %cst_40 = arith.constant dense<0.000000e+00> : vector<1xf32>
      %58 = vector.multi_reduction <add>, %57, %cst_40 [1] : vector<1x4xf32> to vector<1xf32>
      %59 = vector.shape_cast %58 : vector<1xf32> to vector<1x1xf32>
      %cst_41 = arith.constant 6.000000e+00 : f32
      %60 = vector.broadcast %cst_41 : f32 to vector<1x1xf32>
      %61 = arith.divf %59, %60 : vector<1x1xf32>
      %cst_42 = arith.constant 1.000000e+00 : f32
      %62 = vector.broadcast %cst_42 : f32 to vector<1x1xf32>
      %63 = arith.subf %62, %61 : vector<1x1xf32>
      %c0_43 = arith.constant 0 : index
      %c0_44 = arith.constant 0 : index
      %64 = vector.load %arg5[%c0_43, %c0_44] : memref<2x4xf32, #tpu.memory_space<vmem>>, vector<2x4xf32>
      %cst_45 = arith.constant dense<0.000000e+00> : vector<4xf32>
      %65 = vector.multi_reduction <add>, %64, %cst_45 [0] : vector<2x4xf32> to vector<4xf32>
      %66 = vector.shape_cast %65 : vector<4xf32> to vector<1x4xf32>
      %cst_46 = arith.constant dense<0.000000e+00> : vector<1xf32>
      %67 = vector.multi_reduction <add>, %66, %cst_46 [1] : vector<1x4xf32> to vector<1xf32>
      %68 = vector.shape_cast %67 : vector<1xf32> to vector<1x1xf32>
      %cst_47 = arith.constant 0.000000e+00 : f32
      %69 = vector.broadcast %cst_47 : f32 to vector<1x1xf32>
      %70 = arith.subf %69, %68 : vector<1x1xf32>
      %cst_48 = arith.constant 1.280000e+02 : f32
      %71 = vector.broadcast %cst_48 : f32 to vector<1x1xf32>
      %72 = arith.divf %70, %71 : vector<1x1xf32>
      %cst_49 = arith.constant 1.000000e+00 : f32
      %73 = vector.broadcast %cst_49 : f32 to vector<1x1xf32>
      %74 = arith.mulf %73, %72 : vector<1x1xf32>
      %cst_50 = arith.constant 1.000000e+00 : f32
      %75 = vector.broadcast %cst_50 : f32 to vector<1x1xf32>
      %76 = arith.mulf %75, %63 : vector<1x1xf32>
      %77 = arith.addf %74, %76 : vector<1x1xf32>
      %cst_51 = arith.constant 0.285714298 : f32
      %78 = vector.broadcast %cst_51 : f32 to vector<1x1xf32>
      %79 = arith.mulf %78, %77 : vector<1x1xf32>
      %c0_52 = arith.constant 0 : index
      %c0_53 = arith.constant 0 : index
      %80 = vector.load %arg1[%c0_52, %c0_53] : memref<1x1xf32, #tpu.memory_space<vmem>>, vector<1x1xf32>
      %81 = arith.addf %80, %79 : vector<1x1xf32>
      %c0_54 = arith.constant 0 : index
      %c0_55 = arith.constant 0 : index
      %82 = vector.load %arg4[%c0_54, %c0_55] : memref<1x1xf32, #tpu.memory_space<vmem>>, vector<1x1xf32>
      tpu.vector_store %arg4[%c0_54, %c0_55], %81 {strides = array<i32>} : memref<1x1xf32, #tpu.memory_space<vmem>>, vector<1x1xf32>,
    } else {
    }
    return
  }
  func.func @transform_0(%arg0: i32) -> (i32, i32) {
    %c0_i32 = arith.constant 0 : i32
    %c0_i32_0 = arith.constant 0 : i32
    %c0_i32_1 = arith.constant 0 : i32
    return %c0_i32, %c0_i32_0 : i32, i32
  }
  func.func @transform_1(%arg0: i32) -> (i32, i32, i32) {
    %c0_i32 = arith.constant 0 : i32
    %c0_i32_0 = arith.constant 0 : i32
    %c0_i32_1 = arith.constant 0 : i32
    return %c0_i32, %c0_i32_0, %arg0 : i32, i32, i32
  }
  func.func @transform_2(%arg0: i32) -> (i32, i32, i32) {
    %c0_i32 = arith.constant 0 : i32
    %c0_i32_0 = arith.constant 0 : i32
    %c0_i32_1 = arith.constant 0 : i32
    return %c0_i32, %c0_i32_0, %arg0 : i32, i32, i32
  }
  func.func @transform_3(%arg0: i32) -> (i32, i32) {
    %c0_i32 = arith.constant 0 : i32
    %c0_i32_0 = arith.constant 0 : i32
    %c0_i32_1 = arith.constant 0 : i32
    return %c0_i32, %c0_i32_0 : i32, i32
  }
}

module attributes {stable_mosaic.version = 11 : i64} {
  func.func @_ce_dice_level_kernel(%arg0: i32, %arg1: memref<1x1xf32, #tpu.memory_space<vmem>>, %arg2: memref<2x4x16xf32, #tpu.memory_space<vmem>>, %arg3: memref<2x4x16xbf16, #tpu.memory_space<vmem>>, %arg4: memref<1x1xf32, #tpu.memory_space<vmem>>, %arg5: memref<2x4xf32, #tpu.memory_space<vmem>>, %arg6: memref<2x4xf32, #tpu.memory_space<vmem>>, %arg7: memref<2x4xf32, #tpu.memory_space<vmem>>, %arg8: memref<2x4xf32, #tpu.memory_space<vmem>>) attributes {dimension_semantics = [#tpu.dimension_semantics<arbitrary>], iteration_bounds = array<i64: 1>, scalar_prefetch = 0 : i64, scratch_operands = 4 : i64, tpu.core_type = #tpu.core_type<tc>, window_params = [{pipeline_mode = #tpu.pipeline_mode<synchronous>, transform_indices = @transform_0, window_bounds = array<i64: 1, 1>}, {transform_indices = @transform_1, window_bounds = array<i64: 2, 4, 16>}, {transform_indices = @transform_2, window_bounds = array<i64: 2, 4, 16>}, {pipeline_mode = #tpu.pipeline_mode<synchronous>, transform_indices = @transform_3, window_bounds = array<i64: 1, 1>}]} {
    %c0_i32 = arith.constant 0 : i32
    %0 = arith.cmpi eq, %arg0, %c0_i32 : i32
    %1 = arith.extui %0 : i1 to i32
    %c0_i32_0 = arith.constant 0 : i32
    %2 = arith.cmpi ne, %1, %c0_i32_0 : i32
    scf.if %2 {
      %cst_29 = arith.constant 0.000000e+00 : f32
      %40 = vector.broadcast %cst_29 : f32 to vector<2x4xf32>
      %c0_30 = arith.constant 0 : index
      %c0_31 = arith.constant 0 : index
      %41 = vector.load %arg5[%c0_30, %c0_31] : memref<2x4xf32, #tpu.memory_space<vmem>>, vector<2x4xf32>
      tpu.vector_store %arg5[%c0_30, %c0_31], %40 {strides = array<i32>} : memref<2x4xf32, #tpu.memory_space<vmem>>, vector<2x4xf32>,
      %cst_32 = arith.constant 0.000000e+00 : f32
      %42 = vector.broadcast %cst_32 : f32 to vector<2x4xf32>
      %c0_33 = arith.constant 0 : index
      %c0_34 = arith.constant 0 : index
      %43 = vector.load %arg6[%c0_33, %c0_34] : memref<2x4xf32, #tpu.memory_space<vmem>>, vector<2x4xf32>
      tpu.vector_store %arg6[%c0_33, %c0_34], %42 {strides = array<i32>} : memref<2x4xf32, #tpu.memory_space<vmem>>, vector<2x4xf32>,
      %cst_35 = arith.constant 0.000000e+00 : f32
      %44 = vector.broadcast %cst_35 : f32 to vector<2x4xf32>
      %c0_36 = arith.constant 0 : index
      %c0_37 = arith.constant 0 : index
      %45 = vector.load %arg7[%c0_36, %c0_37] : memref<2x4xf32, #tpu.memory_space<vmem>>, vector<2x4xf32>
      tpu.vector_store %arg7[%c0_36, %c0_37], %44 {strides = array<i32>} : memref<2x4xf32, #tpu.memory_space<vmem>>, vector<2x4xf32>,
      %cst_38 = arith.constant 0.000000e+00 : f32
      %46 = vector.broadcast %cst_38 : f32 to vector<2x4xf32>
      %c0_39 = arith.constant 0 : index
      %c0_40 = arith.constant 0 : index
      %47 = vector.load %arg8[%c0_39, %c0_40] : memref<2x4xf32, #tpu.memory_space<vmem>>, vector<2x4xf32>
      tpu.vector_store %arg8[%c0_39, %c0_40], %46 {strides = array<i32>} : memref<2x4xf32, #tpu.memory_space<vmem>>, vector<2x4xf32>,
    } else {
    }
    %c0 = arith.constant 0 : index
    %c0_1 = arith.constant 0 : index
    %c0_2 = arith.constant 0 : index
    %3 = vector.load %arg2[%c0, %c0_1, %c0_2] : memref<2x4x16xf32, #tpu.memory_space<vmem>>, vector<2x4x16xf32>
    %c0_3 = arith.constant 0 : index
    %c0_4 = arith.constant 0 : index
    %c0_5 = arith.constant 0 : index
    %4 = vector.load %arg3[%c0_3, %c0_4, %c0_5] : memref<2x4x16xbf16, #tpu.memory_space<vmem>>, vector<2x4x16xbf16>
    %5 = arith.extf %4 : vector<2x4x16xbf16> to vector<2x4x16xf32>
    %cst = arith.constant dense<0xFF800000> : vector<2x16xf32>
    %6 = vector.multi_reduction <maximumf>, %3, %cst [1] : vector<2x4x16xf32> to vector<2x16xf32>
    %7 = vector.shape_cast %6 : vector<2x16xf32> to vector<2x1x16xf32>
    %8 = vector.broadcast %7 : vector<2x1x16xf32> to vector<2x4x16xf32>
    %9 = arith.subf %3, %8 : vector<2x4x16xf32>
    %10 = math.exp %9 : vector<2x4x16xf32>
    %cst_6 = arith.constant dense<0.000000e+00> : vector<2x16xf32>
    %11 = vector.multi_reduction <add>, %10, %cst_6 [1] : vector<2x4x16xf32> to vector<2x16xf32>
    %12 = vector.shape_cast %11 : vector<2x16xf32> to vector<2x1x16xf32>
    %13 = tpu.reciprocal %12 : vector<2x1x16xf32> -> vector<2x1x16xf32>
    %14 = vector.broadcast %13 : vector<2x1x16xf32> to vector<2x4x16xf32>
    %15 = arith.mulf %10, %14 : vector<2x4x16xf32>
    %16 = math.log %12 : vector<2x1x16xf32>
    %17 = vector.broadcast %16 : vector<2x1x16xf32> to vector<2x4x16xf32>
    %18 = arith.subf %9, %17 : vector<2x4x16xf32>
    %c0_7 = arith.constant 0 : index
    %c0_8 = arith.constant 0 : index
    %19 = vector.load %arg5[%c0_7, %c0_8] : memref<2x4xf32, #tpu.memory_space<vmem>>, vector<2x4xf32>
    %20 = arith.mulf %5, %18 : vector<2x4x16xf32>
    %cst_9 = arith.constant dense<0.000000e+00> : vector<2x4xf32>
    %21 = vector.multi_reduction <add>, %20, %cst_9 [2] : vector<2x4x16xf32> to vector<2x4xf32>
    %22 = arith.addf %19, %21 : vector<2x4xf32>
    %c0_10 = arith.constant 0 : index
    %c0_11 = arith.constant 0 : index
    %23 = vector.load %arg5[%c0_10, %c0_11] : memref<2x4xf32, #tpu.memory_space<vmem>>, vector<2x4xf32>
    tpu.vector_store %arg5[%c0_10, %c0_11], %22 {strides = array<i32>} : memref<2x4xf32, #tpu.memory_space<vmem>>, vector<2x4xf32>,
    %c0_12 = arith.constant 0 : index
    %c0_13 = arith.constant 0 : index
    %24 = vector.load %arg6[%c0_12, %c0_13] : memref<2x4xf32, #tpu.memory_space<vmem>>, vector<2x4xf32>
    %25 = arith.mulf %5, %15 : vector<2x4x16xf32>
    %cst_14 = arith.constant dense<0.000000e+00> : vector<2x4xf32>
    %26 = vector.multi_reduction <add>, %25, %cst_14 [2] : vector<2x4x16xf32> to vector<2x4xf32>
    %27 = arith.addf %24, %26 : vector<2x4xf32>
    %c0_15 = arith.constant 0 : index
    %c0_16 = arith.constant 0 : index
    %28 = vector.load %arg6[%c0_15, %c0_16] : memref<2x4xf32, #tpu.memory_space<vmem>>, vector<2x4xf32>
    tpu.vector_store %arg6[%c0_15, %c0_16], %27 {strides = array<i32>} : memref<2x4xf32, #tpu.memory_space<vmem>>, vector<2x4xf32>,
    %c0_17 = arith.constant 0 : index
    %c0_18 = arith.constant 0 : index
    %29 = vector.load %arg7[%c0_17, %c0_18] : memref<2x4xf32, #tpu.memory_space<vmem>>, vector<2x4xf32>
    %cst_19 = arith.constant dense<0.000000e+00> : vector<2x4xf32>
    %30 = vector.multi_reduction <add>, %5, %cst_19 [2] : vector<2x4x16xf32> to vector<2x4xf32>
    %31 = arith.addf %29, %30 : vector<2x4xf32>
    %c0_20 = arith.constant 0 : index
    %c0_21 = arith.constant 0 : index
    %32 = vector.load %arg7[%c0_20, %c0_21] : memref<2x4xf32, #tpu.memory_space<vmem>>, vector<2x4xf32>
    tpu.vector_store %arg7[%c0_20, %c0_21], %31 {strides = array<i32>} : memref<2x4xf32, #tpu.memory_space<vmem>>, vector<2x4xf32>,
    %c0_22 = arith.constant 0 : index
    %c0_23 = arith.constant 0 : index
    %33 = vector.load %arg8[%c0_22, %c0_23] : memref<2x4xf32, #tpu.memory_space<vmem>>, vector<2x4xf32>
    %cst_24 = arith.constant dense<0.000000e+00> : vector<2x4xf32>
    %34 = vector.multi_reduction <add>, %15, %cst_24 [2] : vector<2x4x16xf32> to vector<2x4xf32>
    %35 = arith.addf %33, %34 : vector<2x4xf32>
    %c0_25 = arith.constant 0 : index
    %c0_26 = arith.constant 0 : index
    %36 = vector.load %arg8[%c0_25, %c0_26] : memref<2x4xf32, #tpu.memory_space<vmem>>, vector<2x4xf32>
    tpu.vector_store %arg8[%c0_25, %c0_26], %35 {strides = array<i32>} : memref<2x4xf32, #tpu.memory_space<vmem>>, vector<2x4xf32>,
    %c0_i32_27 = arith.constant 0 : i32
    %37 = arith.cmpi eq, %arg0, %c0_i32_27 : i32
    %38 = arith.extui %37 : i1 to i32
    %c0_i32_28 = arith.constant 0 : i32
    %39 = arith.cmpi ne, %38, %c0_i32_28 : i32
    scf.if %39 {
      %c0_29 = arith.constant 0 : index
      %c0_30 = arith.constant 0 : index
      %40 = vector.load %arg6[%c0_29, %c0_30] : memref<2x4xf32, #tpu.memory_space<vmem>>, vector<2x4xf32>
      %c0_31 = arith.constant 0 : index
      %c0_32 = arith.constant 0 : index
      %41 = vector.load %arg7[%c0_31, %c0_32] : memref<2x4xf32, #tpu.memory_space<vmem>>, vector<2x4xf32>
      %c0_33 = arith.constant 0 : index
      %c0_34 = arith.constant 0 : index
      %42 = vector.load %arg8[%c0_33, %c0_34] : memref<2x4xf32, #tpu.memory_space<vmem>>, vector<2x4xf32>
      %cst_35 = arith.constant 2.000000e+00 : f32
      %43 = vector.broadcast %cst_35 : f32 to vector<2x4xf32>
      %44 = arith.mulf %43, %40 : vector<2x4xf32>
      %cst_36 = arith.constant 9.99999974E-6 : f32
      %45 = vector.broadcast %cst_36 : f32 to vector<2x4xf32>
      %46 = arith.addf %44, %45 : vector<2x4xf32>
      %47 = arith.addf %41, %42 : vector<2x4xf32>
      %cst_37 = arith.constant 9.99999974E-6 : f32
      %48 = vector.broadcast %cst_37 : f32 to vector<2x4xf32>
      %49 = arith.addf %47, %48 : vector<2x4xf32>
      %50 = arith.divf %46, %49 : vector<2x4xf32>
      %51 = tpu.iota {dimensions = array<i32: 1>} : vector<2x4xi32>
      %c1_i32 = arith.constant 1 : i32
      %52 = vector.broadcast %c1_i32 : i32 to vector<2x4xi32>
      %53 = arith.cmpi sge, %51, %52 : vector<2x4xi32>
      %cst_38 = arith.constant 0.000000e+00 : f32
      %54 = vector.broadcast %cst_38 : f32 to vector<2x4xf32>
      %55 = arith.select %53, %50, %54 : vector<2x4xi1>, vector<2x4xf32>
      %cst_39 = arith.constant dense<0.000000e+00> : vector<4xf32>
      %56 = vector.multi_reduction <add>, %55, %cst_39 [0] : vector<2x4xf32> to vector<4xf32>
      %57 = vector.shape_cast %56 : vector<4xf32> to vector<1x4xf32>
      %cst_40 = arith.constant dense<0.000000e+00> : vector<1xf32>
      %58 = vector.multi_reduction <add>, %57, %cst_40 [1] : vector<1x4xf32> to vector<1xf32>
      %59 = vector.shape_cast %58 : vector<1xf32> to vector<1x1xf32>
      %cst_41 = arith.constant 6.000000e+00 : f32
      %60 = vector.broadcast %cst_41 : f32 to vector<1x1xf32>
      %61 = arith.divf %59, %60 : vector<1x1xf32>
      %cst_42 = arith.constant 1.000000e+00 : f32
      %62 = vector.broadcast %cst_42 : f32 to vector<1x1xf32>
      %63 = arith.subf %62, %61 : vector<1x1xf32>
      %c0_43 = arith.constant 0 : index
      %c0_44 = arith.constant 0 : index
      %64 = vector.load %arg5[%c0_43, %c0_44] : memref<2x4xf32, #tpu.memory_space<vmem>>, vector<2x4xf32>
      %cst_45 = arith.constant dense<0.000000e+00> : vector<4xf32>
      %65 = vector.multi_reduction <add>, %64, %cst_45 [0] : vector<2x4xf32> to vector<4xf32>
      %66 = vector.shape_cast %65 : vector<4xf32> to vector<1x4xf32>
      %cst_46 = arith.constant dense<0.000000e+00> : vector<1xf32>
      %67 = vector.multi_reduction <add>, %66, %cst_46 [1] : vector<1x4xf32> to vector<1xf32>
      %68 = vector.shape_cast %67 : vector<1xf32> to vector<1x1xf32>
      %cst_47 = arith.constant 0.000000e+00 : f32
      %69 = vector.broadcast %cst_47 : f32 to vector<1x1xf32>
      %70 = arith.subf %69, %68 : vector<1x1xf32>
      %cst_48 = arith.constant 3.200000e+01 : f32
      %71 = vector.broadcast %cst_48 : f32 to vector<1x1xf32>
      %72 = arith.divf %70, %71 : vector<1x1xf32>
      %cst_49 = arith.constant 1.000000e+00 : f32
      %73 = vector.broadcast %cst_49 : f32 to vector<1x1xf32>
      %74 = arith.mulf %73, %72 : vector<1x1xf32>
      %cst_50 = arith.constant 1.000000e+00 : f32
      %75 = vector.broadcast %cst_50 : f32 to vector<1x1xf32>
      %76 = arith.mulf %75, %63 : vector<1x1xf32>
      %77 = arith.addf %74, %76 : vector<1x1xf32>
      %cst_51 = arith.constant 0.142857149 : f32
      %78 = vector.broadcast %cst_51 : f32 to vector<1x1xf32>
      %79 = arith.mulf %78, %77 : vector<1x1xf32>
      %c0_52 = arith.constant 0 : index
      %c0_53 = arith.constant 0 : index
      %80 = vector.load %arg1[%c0_52, %c0_53] : memref<1x1xf32, #tpu.memory_space<vmem>>, vector<1x1xf32>
      %81 = arith.addf %80, %79 : vector<1x1xf32>
      %c0_54 = arith.constant 0 : index
      %c0_55 = arith.constant 0 : index
      %82 = vector.load %arg4[%c0_54, %c0_55] : memref<1x1xf32, #tpu.memory_space<vmem>>, vector<1x1xf32>
      tpu.vector_store %arg4[%c0_54, %c0_55], %81 {strides = array<i32>} : memref<1x1xf32, #tpu.memory_space<vmem>>, vector<1x1xf32>,
    } else {
    }
    return
  }
  func.func @transform_0(%arg0: i32) -> (i32, i32) {
    %c0_i32 = arith.constant 0 : i32
    %c0_i32_0 = arith.constant 0 : i32
    %c0_i32_1 = arith.constant 0 : i32
    return %c0_i32, %c0_i32_0 : i32, i32
  }
  func.func @transform_1(%arg0: i32) -> (i32, i32, i32) {
    %c0_i32 = arith.constant 0 : i32
    %c0_i32_0 = arith.constant 0 : i32
    %c0_i32_1 = arith.constant 0 : i32
    return %c0_i32, %c0_i32_0, %arg0 : i32, i32, i32
  }
  func.func @transform_2(%arg0: i32) -> (i32, i32, i32) {
    %c0_i32 = arith.constant 0 : i32
    %c0_i32_0 = arith.constant 0 : i32
    %c0_i32_1 = arith.constant 0 : i32
    return %c0_i32, %c0_i32_0, %arg0 : i32, i32, i32
  }
  func.func @transform_3(%arg0: i32) -> (i32, i32) {
    %c0_i32 = arith.constant 0 : i32
    %c0_i32_0 = arith.constant 0 : i32
    %c0_i32_1 = arith.constant 0 : i32
    return %c0_i32, %c0_i32_0 : i32, i32
  }
}

</mosaic_0001>

<llo_original>
// kernel: _forward.4
$region0: #{_forward.4}
  #allocation0 [shape = 'u32[]', space=smem, size = 0x4, offset = 0x4, fixed_abs, tag = 'smem constant byte address 0x4 - core index']
  #allocation1 [shape = 'u32[144,128]{1,0:T(1,128)}', space=vmem, size = 0x12000, scoped, tag = 'internal scratch']
  #allocation2 [shape = 'f32[2,4]{1,0:T(2,128)}', space=vmem, size = 0x400, scoped, tag = 'scratch operand']
  #allocation3 [shape = 'f32[2,4]{1,0:T(2,128)}', space=vmem, size = 0x400, scoped, tag = 'scratch operand']
  #allocation4 [shape = 'f32[2,4]{1,0:T(2,128)}', space=vmem, size = 0x400, scoped, tag = 'scratch operand']
  #allocation5 [shape = 'f32[2,4]{1,0:T(2,128)}', space=vmem, size = 0x400, scoped, tag = 'scratch operand']
  #allocation6 [shape = 'f32[1,1]{1,0:T(1,128)S(1)}', space=vmem, size = 0x200, scoped, tag = 'scoped memory for _forward.4']
  %s0 = inlined_call_operand.<no memory space> [shape: f32[1,1], index: 0, kind: input, shape index: {}, may-alias: {0,3}]
  %s1 = inlined_call_operand.vmem [shape: f32[2,4,64], index: 1, kind: input, shape index: {}]
  %s2 = inlined_call_operand.vmem [shape: bf16[2,4,64], index: 2, kind: input, shape index: {}]
  %s3 = inlined_call_operand.hbm [shape: f32[1,1], index: 3, kind: output, shape index: {}, may-alias: {0,3}]
  %s4 = sld [smem:[#allocation0]]
  $region30: #{_forward.4} parent=0
    _
  %s6 = ssub.s32 1, %s4
  %s7 = scalar_select 0, %s6, %s4
  %v8 = vstv %s0
  %9 = vst [vmem:[#allocation6] sm:$0x1] %v8
  $region1: #{_forward.4} parent=0
    #allocation7 [shape = 'u8[512]{0}', space=vmem, size = 0x400, scoped, tag = 'output window, operand 0, single buffered']
    #allocation8 [shape = 's32[1]{0}', space=sflag, size = 0x4, scoped, tag = 'scoped memory for _forward.4']
    %10 = vsyncpa [#allocation8], 0
    // Predicated region
    $region2: #{_forward.4} parent=1 // pred_check
      _
    $region3: #{_forward.4} parent=1 // pred_check_branch
      %12 = sbr.rel (0) target = $region5
    $region4: #{_forward.4} parent=1 // pred_region
      _
    $region5: #{_forward.4} parent=1 // pred_fallthru
      _
    // Predicated region
    $region6: #{_forward.4} parent=1 // pred_check
      _
    $region7: #{_forward.4} parent=1 // pred_check_branch
      %14 = sbr.rel (0) target = $region9
    $region8: #{_forward.4} parent=1 // pred_region
      _
    $region9: #{_forward.4} parent=1 // pred_fallthru
      _
    // Predicated region
    $region10: #{_forward.4} parent=1 // pred_check
      _
    $region11: #{_forward.4} parent=1 // pred_check_branch
      %16 = sbr.rel (0) target = $region13
    $region12: #{_forward.4} parent=1 // pred_region
      _
    $region13: #{_forward.4} parent=1 // pred_fallthru
      _
    %p17 = scmp.eq.s32.totalorder 0, 0
    // Predicated region
    $region14: #{_forward.4} parent=1 // pred_check
      %p18 = pneg %p17
    $region15: #{_forward.4} parent=1 // pred_check_branch
      %20 = sbr.rel (%p18) target = $region17
    $region16: #{_forward.4} parent=1 // pred_region
      %vm21 = vcmask 25600
      %22 = vst.msk [vmem:[#allocation2] sm:$0x3] %vm21, 0.0
      %23 = vst.msk [vmem:[#allocation3] sm:$0x3] %vm21, 0.0
      %24 = vst.msk [vmem:[#allocation4] sm:$0x3] %vm21, 0.0
      %25 = vst.msk [vmem:[#allocation5] sm:$0x3] %vm21, 0.0
    $region17: #{_forward.4} parent=1 // pred_fallthru
      _
    %v26 = vld [vmem:[%s1] sm:$0xf]
    %v27 = vld [vmem:[%s1 + $0x4] sm:$0xf]
    %v28 = vld [vmem:[%s2] sm:$0x3]
    %v29 = vld [vmem:[%s2 + $0x2] sm:$0x3]
    %v30 = vunpack.c.l.bf16 %v28
    %v31 = vunpack.c.l.bf16 %v29
    %vm32 = vcmask 519168
    %v33 = vsel %vm32, %v26, -inf
    %v34 = vrot.slane %v33, 4
    %v35 = vmax.f32 %v33, %v34
    %v36 = vrot.slane %v35, 2
    %v37 = vmax.f32 %v35, %v36
    %v38 = vrot.slane %v37, 1
    %v39 = vmax.f32 %v37, %v38
    %v40 = vsel %vm32, %v27, -inf
    %v41 = vrot.slane %v40, 4
    %v42 = vmax.f32 %v40, %v41
    %v43 = vrot.slane %v42, 2
    %v44 = vmax.f32 %v42, %v43
    %v45 = vrot.slane %v44, 1
    %v46 = vmax.f32 %v44, %v45
    %v47 = vsub.f32 %v26, %v39
    %v48 = vsub.f32 %v27, %v46
    %v49 = vmul.f32 %v47, 1.442695
    %v50 = vpow.pop %v49
    %v51 = vmul.f32 %v48, 1.442695
    %v52 = vpow.pop %v51
    %v53 = vsel %vm32, %v50, 0.0
    %v54 = vrot.slane %v53, 4
    %v55 = vadd.f32 %v53, %v54
    %v56 = vrot.slane %v55, 2
    %v57 = vadd.f32 %v55, %v56
    %v58 = vrot.slane %v57, 1
    %v59 = vadd.f32 %v57, %v58
    %v60 = vsel %vm32, %v52, 0.0
    %v61 = vrot.slane %v60, 4
    %v62 = vadd.f32 %v60, %v61
    %v63 = vrot.slane %v62, 2
    %v64 = vadd.f32 %v62, %v63
    %v65 = vrot.slane %v64, 1
    %v66 = vadd.f32 %v64, %v65
    %v67 = vrcp.pop %v59
    %v68 = vrcp.pop %v66
    %v69 = vmul.f32 %v50, %v67
    %v70 = vmul.f32 %v52, %v68
    %v71 = vlog2.pop %v59
    %v72 = vmul.f32 %v71, 0.6931472
    %v73 = vlog2.pop %v66
    %v74 = vmul.f32 %v73, 0.6931472
    %v75 = vsub.f32 %v47, %v72
    %v76 = vsub.f32 %v48, %v74
    %v77 = vld [vmem:[#allocation2] sm:$0x3]
    %v78 = vmul.f32 %v30, %v75
    %v79 = vmul.f32 %v31, %v76
    %v80 = vsel %vm32, %v78, 0.0
    %81 = vadd.xlane.f32.xlu0 %v80
    %v82 = vpop.xlane.xlu0 %81
    %v83 = vsel %vm32, %v79, 0.0
    %84 = vadd.xlane.f32.xlu0 %v83
    %v85 = vpop.xlane.xlu0 %84
    %v88 = vlaneseq
    %v89 = vand.u32 %v88, 127
    %v90 = vlaneseq
    %v91 = vshrl.u32 %v90, 7
    %v92 = vsub.s32 %v89, %v91
    %v93 = vrot.slane %v82, %v92
    %v94 = vlaneseq
    %v95 = vshrl.u32 %v94, 7
    %v96 = vsub.s32 %v89, %v95
    %v97 = vrot.slane %v85, %v96
    %vm98 = vcmask 1041409
    %v99 = vsel %vm98, %v97, %v93
    %v101 = vadd.f32 %v77, %v99
    %vm102 = vcmask 25600
    %103 = vst.msk [vmem:[#allocation2] sm:$0x3] %vm102, %v101
    %v104 = vld [vmem:[#allocation3] sm:$0x3]
    %v105 = vmul.f32 %v30, %v69
    %v106 = vmul.f32 %v31, %v70
    %v107 = vsel %vm32, %v105, 0.0
    %108 = vadd.xlane.f32.xlu0 %v107
    %v109 = vpop.xlane.xlu0 %108
    %v110 = vsel %vm32, %v106, 0.0
    %111 = vadd.xlane.f32.xlu0 %v110
    %v112 = vpop.xlane.xlu0 %111
    %v115 = vlaneseq
    %v116 = vshrl.u32 %v115, 7
    %v117 = vsub.s32 %v89, %v116
    %v118 = vrot.slane %v109, %v117
    %v119 = vlaneseq
    %v120 = vshrl.u32 %v119, 7
    %v121 = vsub.s32 %v89, %v120
    %v122 = vrot.slane %v112, %v121
    %v123 = vsel %vm98, %v122, %v118
    %v125 = vadd.f32 %v104, %v123
    %126 = vst.msk [vmem:[#allocation3] sm:$0x3] %vm102, %v125
    %v127 = vld [vmem:[#allocation4] sm:$0x3]
    %v128 = vsel %vm32, %v30, 0.0
    %129 = vadd.xlane.f32.xlu0 %v128
    %v130 = vpop.xlane.xlu0 %129
    %v131 = vsel %vm32, %v31, 0.0
    %132 = vadd.xlane.f32.xlu0 %v131
    %v133 = vpop.xlane.xlu0 %132
    %v136 = vlaneseq
    %v137 = vshrl.u32 %v136, 7
    %v138 = vsub.s32 %v89, %v137
    %v139 = vrot.slane %v130, %v138
    %v140 = vlaneseq
    %v141 = vshrl.u32 %v140, 7
    %v142 = vsub.s32 %v89, %v141
    %v143 = vrot.slane %v133, %v142
    %v144 = vsel %vm98, %v143, %v139
    %v146 = vadd.f32 %v127, %v144
    %147 = vst.msk [vmem:[#allocation4] sm:$0x3] %vm102, %v146
    %v148 = vld [vmem:[#allocation5] sm:$0x3]
    %v149 = vsel %vm32, %v69, 0.0
    %150 = vadd.xlane.f32.xlu0 %v149
    %v151 = vpop.xlane.xlu0 %150
    %v152 = vsel %vm32, %v70, 0.0
    %153 = vadd.xlane.f32.xlu0 %v152
    %v154 = vpop.xlane.xlu0 %153
    %v157 = vlaneseq
    %v158 = vshrl.u32 %v157, 7
    %v159 = vsub.s32 %v89, %v158
    %v160 = vrot.slane %v151, %v159
    %v161 = vlaneseq
    %v162 = vshrl.u32 %v161, 7
    %v163 = vsub.s32 %v89, %v162
    %v164 = vrot.slane %v154, %v163
    %v165 = vsel %vm98, %v164, %v160
    %v167 = vadd.f32 %v148, %v165
    %168 = vst.msk [vmem:[#allocation5] sm:$0x3] %vm102, %v167
    // Predicated region
    $region18: #{_forward.4} parent=1 // pred_check
      %p169 = pneg %p17
    $region19: #{_forward.4} parent=1 // pred_check_branch
      %171 = sbr.rel (%p169) target = $region21
    $region20: #{_forward.4} parent=1 // pred_region
      %v172 = vld [vmem:[#allocation3] sm:$0x3]
      %v173 = vld [vmem:[#allocation4] sm:$0x3]
      %v174 = vld [vmem:[#allocation5] sm:$0x3]
      %v175 = vmul.f32 %v172, 2.0
      %v176 = vadd.f32 %v175, 1e-05
      %v177 = vadd.f32 %v173, %v174
      %v178 = vadd.f32 %v177, 1e-05
      %v179 = vrcp.pop %v178
      %v180 = vmul.f32 %v176, %v179
      %vm181 = vcmp.ge.s32.totalorder %v89, 1
      %v182 = vsel %vm181, %v180, 0.0
      %v183 = vsel %vm102, %v182, 0.0
      %v184 = vrot.slane %v183, 4
      %v185 = vadd.f32 %v183, %v184
      %v186 = vrot.slane %v185, 2
      %v187 = vadd.f32 %v185, %v186
      %v188 = vrot.slane %v187, 1
      %v189 = vadd.f32 %v187, %v188
      %vm190 = vcmask 31744
      %v191 = vsel %vm190, %v189, 0.0
      %192 = vadd.xlane.f32.xlu0 %v191
      %v193 = vpop.xlane.xlu0 %192
      %v194 = vrcp.pop 6.0
      %v195 = vmul.f32 %v193, %v194
      %v196 = vsub.f32 1.0, %v195
      %v197 = vld [vmem:[#allocation2] sm:$0x3]
      %v198 = vsel %vm102, %v197, 0.0
      %v199 = vrot.slane %v198, 4
      %v200 = vadd.f32 %v198, %v199
      %v201 = vrot.slane %v200, 2
      %v202 = vadd.f32 %v200, %v201
      %v203 = vrot.slane %v202, 1
      %v204 = vadd.f32 %v202, %v203
      %v205 = vsel %vm190, %v204, 0.0
      %206 = vadd.xlane.f32.xlu0 %v205
      %v207 = vpop.xlane.xlu0 %206
      %v208 = vsub.f32 0.0, %v207
      %v209 = vrcp.pop 128.0
      %v210 = vmul.f32 %v208, %v209
      %v211 = vadd.f32 %v210, %v196
      %v212 = vmul.f32 %v211, 0.2857143
      %v213 = vld [vmem:[#allocation6] sm:$0x1]
      %v214 = vadd.f32 %v213, %v212
      %vm215 = vcmask 0
      %216 = vst.msk [vmem:[#allocation7] sm:$0x1] %vm215, %v214
    $region21: #{_forward.4} parent=1 // pred_fallthru
      _
    // Predicated region
    $region22: #{_forward.4} parent=1 // pred_check
      _
    $region23: #{_forward.4} parent=1 // pred_check_branch
      %218 = sbr.rel (0) target = $region25
    $region24: #{_forward.4} parent=1 // pred_region
      %s220 = ssub.s32 16, 16
      %221 = vsyncadd [#allocation8], %s220
      %s223 = sshll.u32 [#allocation7], 4
      %s224 = int_to_ptr.vmem [resolvable:$true] %s223
      %226 = dma.vmem_to_hbm [thread:$0]  %s224, 16, %s3, [#allocation8]
    $region25: #{_forward.4} parent=1 // pred_fallthru
      _
    // Predicated region
    $region26: #{_forward.4} parent=1 // pred_check
      _
    $region27: #{_forward.4} parent=1 // pred_check_branch
      %228 = sbr.rel (0) target = $region29
    $region28: #{_forward.4} parent=1 // pred_region
      %229 = dma.done [#allocation8], 16
    $region29: #{_forward.4} parent=1 // pred_fallthru
      _
    %230 = vsyncpa [#allocation8], 1

// kernel: _forward.3
$region0: #{_forward.3}
  #allocation0 [shape = 'u32[]', space=smem, size = 0x4, offset = 0x4, fixed_abs, tag = 'smem constant byte address 0x4 - core index']
  #allocation1 [shape = 'u32[144,128]{1,0:T(1,128)}', space=vmem, size = 0x12000, scoped, tag = 'internal scratch']
  #allocation2 [shape = 'f32[2,4]{1,0:T(2,128)}', space=vmem, size = 0x400, scoped, tag = 'scratch operand']
  #allocation3 [shape = 'f32[2,4]{1,0:T(2,128)}', space=vmem, size = 0x400, scoped, tag = 'scratch operand']
  #allocation4 [shape = 'f32[2,4]{1,0:T(2,128)}', space=vmem, size = 0x400, scoped, tag = 'scratch operand']
  #allocation5 [shape = 'f32[2,4]{1,0:T(2,128)}', space=vmem, size = 0x400, scoped, tag = 'scratch operand']
  #allocation6 [shape = 'f32[1,1]{1,0:T(1,128)S(1)}', space=vmem, size = 0x200, scoped, tag = 'scoped memory for _forward.3']
  %s0 = inlined_call_operand.<no memory space> [shape: f32[1,1], index: 0, kind: input, shape index: {}, may-alias: {0,3}]
  %s1 = inlined_call_operand.vmem [shape: f32[2,4,256], index: 1, kind: input, shape index: {}]
  %s2 = inlined_call_operand.vmem [shape: bf16[2,4,256], index: 2, kind: input, shape index: {}]
  %s3 = inlined_call_operand.hbm [shape: f32[1,1], index: 3, kind: output, shape index: {}, may-alias: {0,3}]
  %s4 = sld [smem:[#allocation0]]
  $region30: #{_forward.3} parent=0
    _
  %s6 = ssub.s32 1, %s4
  %s7 = scalar_select 0, %s6, %s4
  %v8 = vstv %s0
  %9 = vst [vmem:[#allocation6] sm:$0x1] %v8
  $region1: #{_forward.3} parent=0
    #allocation7 [shape = 'u8[512]{0}', space=vmem, size = 0x400, scoped, tag = 'output window, operand 0, single buffered']
    #allocation8 [shape = 's32[1]{0}', space=sflag, size = 0x4, scoped, tag = 'scoped memory for _forward.3']
    %10 = vsyncpa [#allocation8], 0
    // Predicated region
    $region2: #{_forward.3} parent=1 // pred_check
      _
    $region3: #{_forward.3} parent=1 // pred_check_branch
      %12 = sbr.rel (0) target = $region5
    $region4: #{_forward.3} parent=1 // pred_region
      _
    $region5: #{_forward.3} parent=1 // pred_fallthru
      _
    // Predicated region
    $region6: #{_forward.3} parent=1 // pred_check
      _
    $region7: #{_forward.3} parent=1 // pred_check_branch
      %14 = sbr.rel (0) target = $region9
    $region8: #{_forward.3} parent=1 // pred_region
      _
    $region9: #{_forward.3} parent=1 // pred_fallthru
      _
    // Predicated region
    $region10: #{_forward.3} parent=1 // pred_check
      _
    $region11: #{_forward.3} parent=1 // pred_check_branch
      %16 = sbr.rel (0) target = $region13
    $region12: #{_forward.3} parent=1 // pred_region
      _
    $region13: #{_forward.3} parent=1 // pred_fallthru
      _
    %p17 = scmp.eq.s32.totalorder 0, 0
    // Predicated region
    $region14: #{_forward.3} parent=1 // pred_check
      %p18 = pneg %p17
    $region15: #{_forward.3} parent=1 // pred_check_branch
      %20 = sbr.rel (%p18) target = $region17
    $region16: #{_forward.3} parent=1 // pred_region
      %vm21 = vcmask 25600
      %22 = vst.msk [vmem:[#allocation2] sm:$0x3] %vm21, 0.0
      %23 = vst.msk [vmem:[#allocation3] sm:$0x3] %vm21, 0.0
      %24 = vst.msk [vmem:[#allocation4] sm:$0x3] %vm21, 0.0
      %25 = vst.msk [vmem:[#allocation5] sm:$0x3] %vm21, 0.0
    $region17: #{_forward.3} parent=1 // pred_fallthru
      _
    %v26 = vld [vmem:[%s1] sm:$0xff]
    %v27 = vld [vmem:[%s1 + $0x8] sm:$0xff]
    %v28 = vld [vmem:[%s2] sm:$0xf]
    %v29 = vld [vmem:[%s2 + $0x4] sm:$0xf]
    %v30 = vunpack.c.l.bf16 %v28
    %v31 = vunpack.c.l.bf16 %v29
    %v34 = vcombine.high %v26, %v26
    %v35 = vcombine.high %v27, %v27
    %vm38 = vcmask 1043456
    %v39 = vsel %vm38, %v26, -inf
    %v40 = vrot.slane %v39, 4
    %v41 = vmax.f32 %v39, %v40
    %v42 = vrot.slane %v41, 2
    %v43 = vmax.f32 %v41, %v42
    %v44 = vrot.slane %v43, 1
    %v45 = vmax.f32 %v43, %v44
    %v46 = vsel %vm38, %v34, -inf
    %v47 = vrot.slane %v46, 4
    %v48 = vmax.f32 %v46, %v47
    %v49 = vrot.slane %v48, 2
    %v50 = vmax.f32 %v48, %v49
    %v51 = vrot.slane %v50, 1
    %v52 = vmax.f32 %v50, %v51
    %v53 = vsel %vm38, %v27, -inf
    %v54 = vrot.slane %v53, 4
    %v55 = vmax.f32 %v53, %v54
    %v56 = vrot.slane %v55, 2
    %v57 = vmax.f32 %v55, %v56
    %v58 = vrot.slane %v57, 1
    %v59 = vmax.f32 %v57, %v58
    %v60 = vsel %vm38, %v35, -inf
    %v61 = vrot.slane %v60, 4
    %v62 = vmax.f32 %v60, %v61
    %v63 = vrot.slane %v62, 2
    %v64 = vmax.f32 %v62, %v63
    %v65 = vrot.slane %v64, 1
    %v66 = vmax.f32 %v64, %v65
    %v71 = vcombine.low %v45, %v52
    %v72 = vcombine.low %v59, %v66
    %v75 = vsub.f32 %v26, %v71
    %v76 = vsub.f32 %v27, %v72
    %v77 = vmul.f32 %v75, 1.442695
    %v78 = vpow.pop %v77
    %v79 = vmul.f32 %v76, 1.442695
    %v80 = vpow.pop %v79
    %v83 = vcombine.high %v78, %v78
    %v84 = vcombine.high %v80, %v80
    %v87 = vsel %vm38, %v78, 0.0
    %v88 = vrot.slane %v87, 4
    %v89 = vadd.f32 %v87, %v88
    %v90 = vrot.slane %v89, 2
    %v91 = vadd.f32 %v89, %v90
    %v92 = vrot.slane %v91, 1
    %v93 = vadd.f32 %v91, %v92
    %v94 = vsel %vm38, %v83, 0.0
    %v95 = vrot.slane %v94, 4
    %v96 = vadd.f32 %v94, %v95
    %v97 = vrot.slane %v96, 2
    %v98 = vadd.f32 %v96, %v97
    %v99 = vrot.slane %v98, 1
    %v100 = vadd.f32 %v98, %v99
    %v101 = vsel %vm38, %v80, 0.0
    %v102 = vrot.slane %v101, 4
    %v103 = vadd.f32 %v101, %v102
    %v104 = vrot.slane %v103, 2
    %v105 = vadd.f32 %v103, %v104
    %v106 = vrot.slane %v105, 1
    %v107 = vadd.f32 %v105, %v106
    %v108 = vsel %vm38, %v84, 0.0
    %v109 = vrot.slane %v108, 4
    %v110 = vadd.f32 %v108, %v109
    %v111 = vrot.slane %v110, 2
    %v112 = vadd.f32 %v110, %v111
    %v113 = vrot.slane %v112, 1
    %v114 = vadd.f32 %v112, %v113
    %v115 = vrcp.pop %v93
    %v116 = vrcp.pop %v100
    %v117 = vrcp.pop %v107
    %v118 = vrcp.pop %v114
    %v123 = vcombine.low %v115, %v116
    %v124 = vcombine.low %v117, %v118
    %v127 = vmul.f32 %v78, %v123
    %v128 = vmul.f32 %v80, %v124
    %v129 = vlog2.pop %v93
    %v130 = vmul.f32 %v129, 0.6931472
    %v131 = vlog2.pop %v100
    %v132 = vmul.f32 %v131, 0.6931472
    %v133 = vlog2.pop %v107
    %v134 = vmul.f32 %v133, 0.6931472
    %v135 = vlog2.pop %v114
    %v136 = vmul.f32 %v135, 0.6931472
    %v141 = vcombine.low %v130, %v132
    %v142 = vcombine.low %v134, %v136
    %v145 = vsub.f32 %v75, %v141
    %v146 = vsub.f32 %v76, %v142
    %v147 = vld [vmem:[#allocation2] sm:$0x3]
    %v148 = vmul.f32 %v30, %v145
    %v149 = vmul.f32 %v31, %v146
    %v152 = vcombine.high %v148, %v148
    %v153 = vcombine.high %v149, %v149
    %v156 = vsel %vm38, %v148, 0.0
    %v157 = vsel %vm38, %v152, 0.0
    %v158 = vadd.f32 %v156, %v157
    %159 = vadd.xlane.f32.xlu0 %v158
    %v160 = vpop.xlane.xlu0 %159
    %v161 = vsel %vm38, %v149, 0.0
    %v162 = vsel %vm38, %v153, 0.0
    %v163 = vadd.f32 %v161, %v162
    %164 = vadd.xlane.f32.xlu0 %v163
    %v165 = vpop.xlane.xlu0 %164
    %v168 = vlaneseq
    %v169 = vand.u32 %v168, 127
    %v170 = vlaneseq
    %v171 = vshrl.u32 %v170, 7
    %v172 = vsub.s32 %v169, %v171
    %v173 = vrot.slane %v160, %v172
    %v174 = vlaneseq
    %v175 = vshrl.u32 %v174, 7
    %v176 = vsub.s32 %v169, %v175
    %v177 = vrot.slane %v165, %v176
    %vm178 = vcmask 1041409
    %v179 = vsel %vm178, %v177, %v173
    %v181 = vadd.f32 %v147, %v179
    %vm182 = vcmask 25600
    %183 = vst.msk [vmem:[#allocation2] sm:$0x3] %vm182, %v181
    %v184 = vld [vmem:[#allocation3] sm:$0x3]
    %v185 = vmul.f32 %v30, %v127
    %v186 = vmul.f32 %v31, %v128
    %v189 = vcombine.high %v185, %v185
    %v190 = vcombine.high %v186, %v186
    %v193 = vsel %vm38, %v185, 0.0
    %v194 = vsel %vm38, %v189, 0.0
    %v195 = vadd.f32 %v193, %v194
    %196 = vadd.xlane.f32.xlu0 %v195
    %v197 = vpop.xlane.xlu0 %196
    %v198 = vsel %vm38, %v186, 0.0
    %v199 = vsel %vm38, %v190, 0.0
    %v200 = vadd.f32 %v198, %v199
    %201 = vadd.xlane.f32.xlu0 %v200
    %v202 = vpop.xlane.xlu0 %201
    %v205 = vlaneseq
    %v206 = vshrl.u32 %v205, 7
    %v207 = vsub.s32 %v169, %v206
    %v208 = vrot.slane %v197, %v207
    %v209 = vlaneseq
    %v210 = vshrl.u32 %v209, 7
    %v211 = vsub.s32 %v169, %v210
    %v212 = vrot.slane %v202, %v211
    %v213 = vsel %vm178, %v212, %v208
    %v215 = vadd.f32 %v184, %v213
    %216 = vst.msk [vmem:[#allocation3] sm:$0x3] %vm182, %v215
    %v217 = vld [vmem:[#allocation4] sm:$0x3]
    %v220 = vcombine.high %v30, %v30
    %v221 = vcombine.high %v31, %v31
    %v224 = vsel %vm38, %v30, 0.0
    %v225 = vsel %vm38, %v220, 0.0
    %v226 = vadd.f32 %v224, %v225
    %227 = vadd.xlane.f32.xlu0 %v226
    %v228 = vpop.xlane.xlu0 %227
    %v229 = vsel %vm38, %v31, 0.0
    %v230 = vsel %vm38, %v221, 0.0
    %v231 = vadd.f32 %v229, %v230
    %232 = vadd.xlane.f32.xlu0 %v231
    %v233 = vpop.xlane.xlu0 %232
    %v236 = vlaneseq
    %v237 = vshrl.u32 %v236, 7
    %v238 = vsub.s32 %v169, %v237
    %v239 = vrot.slane %v228, %v238
    %v240 = vlaneseq
    %v241 = vshrl.u32 %v240, 7
    %v242 = vsub.s32 %v169, %v241
    %v243 = vrot.slane %v233, %v242
    %v244 = vsel %vm178, %v243, %v239
    %v246 = vadd.f32 %v217, %v244
    %247 = vst.msk [vmem:[#allocation4] sm:$0x3] %vm182, %v246
    %v248 = vld [vmem:[#allocation5] sm:$0x3]
    %v251 = vcombine.high %v127, %v127
    %v252 = vcombine.high %v128, %v128
    %v255 = vsel %vm38, %v127, 0.0
    %v256 = vsel %vm38, %v251, 0.0
    %v257 = vadd.f32 %v255, %v256
    %258 = vadd.xlane.f32.xlu0 %v257
    %v259 = vpop.xlane.xlu0 %258
    %v260 = vsel %vm38, %v128, 0.0
    %v261 = vsel %vm38, %v252, 0.0
    %v262 = vadd.f32 %v260, %v261
    %263 = vadd.xlane.f32.xlu0 %v262
    %v264 = vpop.xlane.xlu0 %263
    %v267 = vlaneseq
    %v268 = vshrl.u32 %v267, 7
    %v269 = vsub.s32 %v169, %v268
    %v270 = vrot.slane %v259, %v269
    %v271 = vlaneseq
    %v272 = vshrl.u32 %v271, 7
    %v273 = vsub.s32 %v169, %v272
    %v274 = vrot.slane %v264, %v273
    %v275 = vsel %vm178, %v274, %v270
    %v277 = vadd.f32 %v248, %v275
    %278 = vst.msk [vmem:[#allocation5] sm:$0x3] %vm182, %v277
    // Predicated region
    $region18: #{_forward.3} parent=1 // pred_check
      %p279 = pneg %p17
    $region19: #{_forward.3} parent=1 // pred_check_branch
      %281 = sbr.rel (%p279) target = $region21
    $region20: #{_forward.3} parent=1 // pred_region
      %v282 = vld [vmem:[#allocation3] sm:$0x3]
      %v283 = vld [vmem:[#allocation4] sm:$0x3]
      %v284 = vld [vmem:[#allocation5] sm:$0x3]
      %v285 = vmul.f32 %v282, 2.0
      %v286 = vadd.f32 %v285, 1e-05
      %v287 = vadd.f32 %v283, %v284
      %v288 = vadd.f32 %v287, 1e-05
      %v289 = vrcp.pop %v288
      %v290 = vmul.f32 %v286, %v289
      %vm291 = vcmp.ge.s32.totalorder %v169, 1
      %v292 = vsel %vm291, %v290, 0.0
      %v293 = vsel %vm182, %v292, 0.0
      %v294 = vrot.slane %v293, 4
      %v295 = vadd.f32 %v293, %v294
      %v296 = vrot.slane %v295, 2
      %v297 = vadd.f32 %v295, %v296
      %v298 = vrot.slane %v297, 1
      %v299 = vadd.f32 %v297, %v298
      %vm300 = vcmask 31744
      %v301 = vsel %vm300, %v299, 0.0
      %302 = vadd.xlane.f32.xlu0 %v301
      %v303 = vpop.xlane.xlu0 %302
      %v304 = vrcp.pop 6.0
      %v305 = vmul.f32 %v303, %v304
      %v306 = vsub.f32 1.0, %v305
      %v307 = vld [vmem:[#allocation2] sm:$0x3]
      %v308 = vsel %vm182, %v307, 0.0
      %v309 = vrot.slane %v308, 4
      %v310 = vadd.f32 %v308, %v309
      %v311 = vrot.slane %v310, 2
      %v312 = vadd.f32 %v310, %v311
      %v313 = vrot.slane %v312, 1
      %v314 = vadd.f32 %v312, %v313
      %v315 = vsel %vm300, %v314, 0.0
      %316 = vadd.xlane.f32.xlu0 %v315
      %v317 = vpop.xlane.xlu0 %316
      %v318 = vsub.f32 0.0, %v317
      %v319 = vrcp.pop 512.0
      %v320 = vmul.f32 %v318, %v319
      %v321 = vadd.f32 %v320, %v306
      %v322 = vmul.f32 %v321, 0.5714286
      %v323 = vld [vmem:[#allocation6] sm:$0x1]
      %v324 = vadd.f32 %v323, %v322
      %vm325 = vcmask 0
      %326 = vst.msk [vmem:[#allocation7] sm:$0x1] %vm325, %v324
    $region21: #{_forward.3} parent=1 // pred_fallthru
      _
    // Predicated region
    $region22: #{_forward.3} parent=1 // pred_check
      _
    $region23: #{_forward.3} parent=1 // pred_check_branch
      %328 = sbr.rel (0) target = $region25
    $region24: #{_forward.3} parent=1 // pred_region
      %s330 = ssub.s32 16, 16
      %331 = vsyncadd [#allocation8], %s330
      %s333 = sshll.u32 [#allocation7], 4
      %s334 = int_to_ptr.vmem [resolvable:$true] %s333
      %336 = dma.vmem_to_hbm [thread:$0]  %s334, 16, %s3, [#allocation8]
    $region25: #{_forward.3} parent=1 // pred_fallthru
      _
    // Predicated region
    $region26: #{_forward.3} parent=1 // pred_check
      _
    $region27: #{_forward.3} parent=1 // pred_check_branch
      %338 = sbr.rel (0) target = $region29
    $region28: #{_forward.3} parent=1 // pred_region
      %339 = dma.done [#allocation8], 16
    $region29: #{_forward.3} parent=1 // pred_fallthru
      _
    %340 = vsyncpa [#allocation8], 1

// kernel: _forward.5
$region0: #{_forward.5}
  #allocation0 [shape = 'u32[]', space=smem, size = 0x4, offset = 0x4, fixed_abs, tag = 'smem constant byte address 0x4 - core index']
  #allocation1 [shape = 'u32[144,128]{1,0:T(1,128)}', space=vmem, size = 0x12000, scoped, tag = 'internal scratch']
  #allocation2 [shape = 'f32[2,4]{1,0:T(2,128)}', space=vmem, size = 0x400, scoped, tag = 'scratch operand']
  #allocation3 [shape = 'f32[2,4]{1,0:T(2,128)}', space=vmem, size = 0x400, scoped, tag = 'scratch operand']
  #allocation4 [shape = 'f32[2,4]{1,0:T(2,128)}', space=vmem, size = 0x400, scoped, tag = 'scratch operand']
  #allocation5 [shape = 'f32[2,4]{1,0:T(2,128)}', space=vmem, size = 0x400, scoped, tag = 'scratch operand']
  #allocation6 [shape = 'f32[1,1]{1,0:T(1,128)S(1)}', space=vmem, size = 0x200, scoped, tag = 'scoped memory for _forward.5']
  %s0 = inlined_call_operand.<no memory space> [shape: f32[1,1], index: 0, kind: input, shape index: {}, may-alias: {0,3}]
  %s1 = inlined_call_operand.vmem [shape: f32[2,4,16], index: 1, kind: input, shape index: {}]
  %s2 = inlined_call_operand.vmem [shape: bf16[2,4,16], index: 2, kind: input, shape index: {}]
  %s3 = inlined_call_operand.hbm [shape: f32[1,1], index: 3, kind: output, shape index: {}, may-alias: {0,3}]
  %s4 = sld [smem:[#allocation0]]
  $region30: #{_forward.5} parent=0
    _
  %s6 = ssub.s32 1, %s4
  %s7 = scalar_select 0, %s6, %s4
  %v8 = vstv %s0
  %9 = vst [vmem:[#allocation6] sm:$0x1] %v8
  $region1: #{_forward.5} parent=0
    #allocation7 [shape = 'u8[512]{0}', space=vmem, size = 0x400, scoped, tag = 'output window, operand 0, single buffered']
    #allocation8 [shape = 's32[1]{0}', space=sflag, size = 0x4, scoped, tag = 'scoped memory for _forward.5']
    %10 = vsyncpa [#allocation8], 0
    // Predicated region
    $region2: #{_forward.5} parent=1 // pred_check
      _
    $region3: #{_forward.5} parent=1 // pred_check_branch
      %12 = sbr.rel (0) target = $region5
    $region4: #{_forward.5} parent=1 // pred_region
      _
    $region5: #{_forward.5} parent=1 // pred_fallthru
      _
    // Predicated region
    $region6: #{_forward.5} parent=1 // pred_check
      _
    $region7: #{_forward.5} parent=1 // pred_check_branch
      %14 = sbr.rel (0) target = $region9
    $region8: #{_forward.5} parent=1 // pred_region
      _
    $region9: #{_forward.5} parent=1 // pred_fallthru
      _
    // Predicated region
    $region10: #{_forward.5} parent=1 // pred_check
      _
    $region11: #{_forward.5} parent=1 // pred_check_branch
      %16 = sbr.rel (0) target = $region13
    $region12: #{_forward.5} parent=1 // pred_region
      _
    $region13: #{_forward.5} parent=1 // pred_fallthru
      _
    %p17 = scmp.eq.s32.totalorder 0, 0
    // Predicated region
    $region14: #{_forward.5} parent=1 // pred_check
      %p18 = pneg %p17
    $region15: #{_forward.5} parent=1 // pred_check_branch
      %20 = sbr.rel (%p18) target = $region17
    $region16: #{_forward.5} parent=1 // pred_region
      %vm21 = vcmask 25600
      %22 = vst.msk [vmem:[#allocation2] sm:$0x3] %vm21, 0.0
      %23 = vst.msk [vmem:[#allocation3] sm:$0x3] %vm21, 0.0
      %24 = vst.msk [vmem:[#allocation4] sm:$0x3] %vm21, 0.0
      %25 = vst.msk [vmem:[#allocation5] sm:$0x3] %vm21, 0.0
    $region17: #{_forward.5} parent=1 // pred_fallthru
      _
    %v26 = vld [vmem:[%s1] sm:$0xf]
    %v27 = vld [vmem:[%s1 + $0x4] sm:$0xf]
    %v28 = vld [vmem:[%s2] sm:$0x3]
    %v29 = vld [vmem:[%s2 + $0x2] sm:$0x3]
    %v30 = vunpack.c.l.bf16 %v28
    %v31 = vunpack.c.l.bf16 %v29
    %vm32 = vcmask 125952
    %v33 = vsel %vm32, %v26, -inf
    %v34 = vrot.slane %v33, 4
    %v35 = vmax.f32 %v33, %v34
    %v36 = vrot.slane %v35, 2
    %v37 = vmax.f32 %v35, %v36
    %v38 = vrot.slane %v37, 1
    %v39 = vmax.f32 %v37, %v38
    %v40 = vsel %vm32, %v27, -inf
    %v41 = vrot.slane %v40, 4
    %v42 = vmax.f32 %v40, %v41
    %v43 = vrot.slane %v42, 2
    %v44 = vmax.f32 %v42, %v43
    %v45 = vrot.slane %v44, 1
    %v46 = vmax.f32 %v44, %v45
    %v47 = vsub.f32 %v26, %v39
    %v48 = vsub.f32 %v27, %v46
    %v49 = vmul.f32 %v47, 1.442695
    %v50 = vpow.pop %v49
    %v51 = vmul.f32 %v48, 1.442695
    %v52 = vpow.pop %v51
    %v53 = vsel %vm32, %v50, 0.0
    %v54 = vrot.slane %v53, 4
    %v55 = vadd.f32 %v53, %v54
    %v56 = vrot.slane %v55, 2
    %v57 = vadd.f32 %v55, %v56
    %v58 = vrot.slane %v57, 1
    %v59 = vadd.f32 %v57, %v58
    %v60 = vsel %vm32, %v52, 0.0
    %v61 = vrot.slane %v60, 4
    %v62 = vadd.f32 %v60, %v61
    %v63 = vrot.slane %v62, 2
    %v64 = vadd.f32 %v62, %v63
    %v65 = vrot.slane %v64, 1
    %v66 = vadd.f32 %v64, %v65
    %v67 = vrcp.pop %v59
    %v68 = vrcp.pop %v66
    %v69 = vmul.f32 %v50, %v67
    %v70 = vmul.f32 %v52, %v68
    %v71 = vlog2.pop %v59
    %v72 = vmul.f32 %v71, 0.6931472
    %v73 = vlog2.pop %v66
    %v74 = vmul.f32 %v73, 0.6931472
    %v75 = vsub.f32 %v47, %v72
    %v76 = vsub.f32 %v48, %v74
    %v77 = vld [vmem:[#allocation2] sm:$0x3]
    %v78 = vmul.f32 %v30, %v75
    %v79 = vmul.f32 %v31, %v76
    %v80 = vsel %vm32, %v78, 0.0
    %81 = vadd.xlane.f32.xlu0 %v80
    %v82 = vpop.xlane.xlu0 %81
    %v83 = vsel %vm32, %v79, 0.0
    %84 = vadd.xlane.f32.xlu0 %v83
    %v85 = vpop.xlane.xlu0 %84
    %v88 = vlaneseq
    %v89 = vand.u32 %v88, 127
    %v90 = vlaneseq
    %v91 = vshrl.u32 %v90, 7
    %v92 = vsub.s32 %v89, %v91
    %v93 = vrot.slane %v82, %v92
    %v94 = vlaneseq
    %v95 = vshrl.u32 %v94, 7
    %v96 = vsub.s32 %v89, %v95
    %v97 = vrot.slane %v85, %v96
    %vm98 = vcmask 1041409
    %v99 = vsel %vm98, %v97, %v93
    %v101 = vadd.f32 %v77, %v99
    %vm102 = vcmask 25600
    %103 = vst.msk [vmem:[#allocation2] sm:$0x3] %vm102, %v101
    %v104 = vld [vmem:[#allocation3] sm:$0x3]
    %v105 = vmul.f32 %v30, %v69
    %v106 = vmul.f32 %v31, %v70
    %v107 = vsel %vm32, %v105, 0.0
    %108 = vadd.xlane.f32.xlu0 %v107
    %v109 = vpop.xlane.xlu0 %108
    %v110 = vsel %vm32, %v106, 0.0
    %111 = vadd.xlane.f32.xlu0 %v110
    %v112 = vpop.xlane.xlu0 %111
    %v115 = vlaneseq
    %v116 = vshrl.u32 %v115, 7
    %v117 = vsub.s32 %v89, %v116
    %v118 = vrot.slane %v109, %v117
    %v119 = vlaneseq
    %v120 = vshrl.u32 %v119, 7
    %v121 = vsub.s32 %v89, %v120
    %v122 = vrot.slane %v112, %v121
    %v123 = vsel %vm98, %v122, %v118
    %v125 = vadd.f32 %v104, %v123
    %126 = vst.msk [vmem:[#allocation3] sm:$0x3] %vm102, %v125
    %v127 = vld [vmem:[#allocation4] sm:$0x3]
    %v128 = vsel %vm32, %v30, 0.0
    %129 = vadd.xlane.f32.xlu0 %v128
    %v130 = vpop.xlane.xlu0 %129
    %v131 = vsel %vm32, %v31, 0.0
    %132 = vadd.xlane.f32.xlu0 %v131
    %v133 = vpop.xlane.xlu0 %132
    %v136 = vlaneseq
    %v137 = vshrl.u32 %v136, 7
    %v138 = vsub.s32 %v89, %v137
    %v139 = vrot.slane %v130, %v138
    %v140 = vlaneseq
    %v141 = vshrl.u32 %v140, 7
    %v142 = vsub.s32 %v89, %v141
    %v143 = vrot.slane %v133, %v142
    %v144 = vsel %vm98, %v143, %v139
    %v146 = vadd.f32 %v127, %v144
    %147 = vst.msk [vmem:[#allocation4] sm:$0x3] %vm102, %v146
    %v148 = vld [vmem:[#allocation5] sm:$0x3]
    %v149 = vsel %vm32, %v69, 0.0
    %150 = vadd.xlane.f32.xlu0 %v149
    %v151 = vpop.xlane.xlu0 %150
    %v152 = vsel %vm32, %v70, 0.0
    %153 = vadd.xlane.f32.xlu0 %v152
    %v154 = vpop.xlane.xlu0 %153
    %v157 = vlaneseq
    %v158 = vshrl.u32 %v157, 7
    %v159 = vsub.s32 %v89, %v158
    %v160 = vrot.slane %v151, %v159
    %v161 = vlaneseq
    %v162 = vshrl.u32 %v161, 7
    %v163 = vsub.s32 %v89, %v162
    %v164 = vrot.slane %v154, %v163
    %v165 = vsel %vm98, %v164, %v160
    %v167 = vadd.f32 %v148, %v165
    %168 = vst.msk [vmem:[#allocation5] sm:$0x3] %vm102, %v167
    // Predicated region
    $region18: #{_forward.5} parent=1 // pred_check
      %p169 = pneg %p17
    $region19: #{_forward.5} parent=1 // pred_check_branch
      %171 = sbr.rel (%p169) target = $region21
    $region20: #{_forward.5} parent=1 // pred_region
      %v172 = vld [vmem:[#allocation3] sm:$0x3]
      %v173 = vld [vmem:[#allocation4] sm:$0x3]
      %v174 = vld [vmem:[#allocation5] sm:$0x3]
      %v175 = vmul.f32 %v172, 2.0
      %v176 = vadd.f32 %v175, 1e-05
      %v177 = vadd.f32 %v173, %v174
      %v178 = vadd.f32 %v177, 1e-05
      %v179 = vrcp.pop %v178
      %v180 = vmul.f32 %v176, %v179
      %vm181 = vcmp.ge.s32.totalorder %v89, 1
      %v182 = vsel %vm181, %v180, 0.0
      %v183 = vsel %vm102, %v182, 0.0
      %v184 = vrot.slane %v183, 4
      %v185 = vadd.f32 %v183, %v184
      %v186 = vrot.slane %v185, 2
      %v187 = vadd.f32 %v185, %v186
      %v188 = vrot.slane %v187, 1
      %v189 = vadd.f32 %v187, %v188
      %vm190 = vcmask 31744
      %v191 = vsel %vm190, %v189, 0.0
      %192 = vadd.xlane.f32.xlu0 %v191
      %v193 = vpop.xlane.xlu0 %192
      %v194 = vrcp.pop 6.0
      %v195 = vmul.f32 %v193, %v194
      %v196 = vsub.f32 1.0, %v195
      %v197 = vld [vmem:[#allocation2] sm:$0x3]
      %v198 = vsel %vm102, %v197, 0.0
      %v199 = vrot.slane %v198, 4
      %v200 = vadd.f32 %v198, %v199
      %v201 = vrot.slane %v200, 2
      %v202 = vadd.f32 %v200, %v201
      %v203 = vrot.slane %v202, 1
      %v204 = vadd.f32 %v202, %v203
      %v205 = vsel %vm190, %v204, 0.0
      %206 = vadd.xlane.f32.xlu0 %v205
      %v207 = vpop.xlane.xlu0 %206
      %v208 = vsub.f32 0.0, %v207
      %v209 = vrcp.pop 32.0
      %v210 = vmul.f32 %v208, %v209
      %v211 = vadd.f32 %v210, %v196
      %v212 = vmul.f32 %v211, 0.14285715
      %v213 = vld [vmem:[#allocation6] sm:$0x1]
      %v214 = vadd.f32 %v213, %v212
      %vm215 = vcmask 0
      %216 = vst.msk [vmem:[#allocation7] sm:$0x1] %vm215, %v214
    $region21: #{_forward.5} parent=1 // pred_fallthru
      _
    // Predicated region
    $region22: #{_forward.5} parent=1 // pred_check
      _
    $region23: #{_forward.5} parent=1 // pred_check_branch
      %218 = sbr.rel (0) target = $region25
    $region24: #{_forward.5} parent=1 // pred_region
      %s220 = ssub.s32 16, 16
      %221 = vsyncadd [#allocation8], %s220
      %s223 = sshll.u32 [#allocation7], 4
      %s224 = int_to_ptr.vmem [resolvable:$true] %s223
      %226 = dma.vmem_to_hbm [thread:$0]  %s224, 16, %s3, [#allocation8]
    $region25: #{_forward.5} parent=1 // pred_fallthru
      _
    // Predicated region
    $region26: #{_forward.5} parent=1 // pred_check
      _
    $region27: #{_forward.5} parent=1 // pred_check_branch
      %228 = sbr.rel (0) target = $region29
    $region28: #{_forward.5} parent=1 // pred_region
      %229 = dma.done [#allocation8], 16
    $region29: #{_forward.5} parent=1 // pred_fallthru
      _
    %230 = vsyncpa [#allocation8], 1

</llo_original>
